<compile_context>
chip_gen: v7x
topology: tpu7x:2x2x1
jax: 0.10.0
libtpu: 0.0.40
codegen_flags: <defaults>
</compile_context>

<pallas_src>
import jax
import jax.numpy as jnp
from jax import lax
from jax.experimental import pallas as pl
from jax.experimental.pallas import tpu as pltpu

_GROUP = 8                      # timesteps per inner (unrolled) block / y store
_SQRT_HALF = 0.7071067811865476


def _erf(x):
    # Abramowitz & Stegun 7.1.26 rational approximation, |err| <= 1.5e-7.
    # Only exp / mul / add / select -> guaranteed Mosaic lowering.
    ax = jnp.abs(x)
    t = 1.0 / (1.0 + 0.3275911 * ax)
    poly = t * (0.254829592 + t * (-0.284496736 + t * (1.421413741
               + t * (-1.453152027 + t * 1.061405429))))
    y = 1.0 - poly * jnp.exp(-ax * ax)
    return jnp.where(x < 0.0, -y, y)


def _gelu_exact(x):
    return 0.5 * x * (1.0 + _erf(x * _SQRT_HALF))


# ----------------------------------------------------------------------------
# Pallas kernel: diagonal-SSM scan + D skip + GELU + fused Linear(H->2H) + GLU
# ----------------------------------------------------------------------------
def _s4_layer_kernel(x_ref, are_ref, aim_ref, a2re_ref, a2im_ref,
                     cre_ref, cim_ref, d_ref, w_ref, b_ref,
                     o_ref, ure_sc, uim_sc, y_sc):
    lc = pl.program_id(1)

    # Reset the carried SSM state at the start of every batch's sequence.
    # Correctness requires the L grid axis to stay "arbitrary" (sequential) —
    # do not flip it to "parallel" (it would race ure_sc/uim_sc).
    @pl.when(lc == 0)
    def _():
        ure_sc[...] = jnp.zeros_like(ure_sc)
        uim_sc[...] = jnp.zeros_like(uim_sc)

    a_re, a_im = are_ref[...], aim_ref[...]        # (N, H)  A_bar
    a2_re, a2_im = a2re_ref[...], a2im_ref[...]    # (N, H)  A_bar^2
    c_re, c_im = cre_ref[...], cim_ref[...]        # (N, H)  2*C'
    tL, H = y_sc.shape

    def xrow(t):
        # (1, H) row; broadcasts over the N axis in the arithmetic below.
        return x_ref[pl.ds(t, 1), :]

    def c_out(u_re, u_im):
        # y_t = 2*Re(C' . u_t)  (factor 2 folded into C'), reduce over N (XLU).
        return jnp.sum(c_re * u_re - c_im * u_im, axis=0, keepdims=True)

    def group(g, carry):
        # carry = SSM state u at position (g*_GROUP - 1).
        u_re, u_im = carry
        base = pl.multiple_of(g * _GROUP, _GROUP)
        x0, x1 = xrow(base), xrow(base + 1)
        # Two independent chains stepping by A_bar^2:
        #   E_j = u[base + 2j]   (even positions)
        #   O_j = u[base + 2j+1] (odd positions)
        # E_0 = A*u + x0 ;  O_0 = A^2*u + (A*x0 + x1)  (both one step from u).
        e_re = a_re * u_re - a_im * u_im + x0
        e_im = a_re * u_im + a_im * u_re
        o_re = a2_re * u_re - a2_im * u_im + (a_re * x0 + x1)
        o_im = a2_re * u_im + a2_im * u_re + a_im * x0
        rows = [c_out(e_re, e_im), c_out(o_re, o_im)]
        x_prev = x1
        for j in range(1, _GROUP // 2):            # unrolled; 2-way chain ILP
            t = base + 2 * j
            xt, xp1 = xrow(t), xrow(t + 1)
            we_re = a_re * x_prev + xt             # A*x[t-1] + x[t]   (off-chain)
            we_im = a_im * x_prev
            wo_re = a_re * xt + xp1                # A*x[t]   + x[t+1] (off-chain)
            wo_im = a_im * xt
            ne_re = a2_re * e_re - a2_im * e_im + we_re
            ne_im = a2_re * e_im + a2_im * e_re + we_im
            no_re = a2_re * o_re - a2_im * o_im + wo_re
            no_im = a2_re * o_im + a2_im * o_re + wo_im
            e_re, e_im, o_re, o_im = ne_re, ne_im, no_re, no_im
            rows.append(c_out(e_re, e_im))
            rows.append(c_out(o_re, o_im))
            x_prev = xp1
        # One aligned, unmasked (_GROUP, H) store instead of _GROUP masked rows.
        y_sc[pl.ds(base, _GROUP), :] = jnp.concatenate(rows, axis=0)
        return (o_re, o_im)                        # state at base + _GROUP - 1

    u_re, u_im = lax.fori_loop(0, tL // _GROUP, group,
                               (ure_sc[...], uim_sc[...]))
    ure_sc[...] = u_re
    uim_sc[...] = u_im

    # Fused epilogue: D skip + exact-erf GELU + single fused GLU projection
    # ((tL,H)@(H,2H) bf16 MXU matmul with f32 accumulation).
    x = x_ref[...]
    y = y_sc[...] + x * d_ref[...]
    y = _gelu_exact(y)
    z = jnp.dot(y.astype(w_ref.dtype), w_ref[...],
                preferred_element_type=jnp.float32) + b_ref[...]
    zl, zg = z[:, :H], z[:, H:]
    o_ref[...] = (zl * (1.0 / (1.0 + jnp.exp(-zg)))).astype(o_ref.dtype)


def s4_layer_pallas(x, abar_re, abar_im, ck_re, ck_im, D, W_fused, bias, *,
                    tL=256):
    B, L, H = x.shape
    N = abar_re.shape[0]
    tL = min(tL, L)
    assert H % 128 == 0, "H must be a multiple of 128 (lane-dense GLU split)"
    assert L % tL == 0, "L must be divisible by the L-chunk size tL"
    assert tL % _GROUP == 0, "tL must be a multiple of the scan group size"
    nL = L // tL

    # A_bar^2 for the interleaved even/odd recurrence chains.
    a2_re = abar_re * abar_re - abar_im * abar_im
    a2_im = 2.0 * abar_re * abar_im

    # Advisory cost for XLA scheduling around the custom call.
    flops = B * L * (16 * N * H + 2 * H * (2 * H) + 30 * H)
    transcendentals = 2 * B * L * H                      # exp in gelu + sigmoid
    bytes_accessed = (4 * 2 * B * L * H                  # x in, out
                      + 2 * H * 2 * H                    # bf16 fused W
                      + 4 * (6 * N * H + 5 * H))         # A_bar, A_bar^2, C', D, bias
    cost = pl.CostEstimate(flops=int(flops),
                           transcendentals=int(transcendentals),
                           bytes_accessed=int(bytes_accessed))

    inv = lambda b, lc: (0, 0)   # grid-invariant operands (weights / SSM params)
    # TODO(synk): at much larger H, mark the invariant in_specs below with
    # pipeline_mode=pl.Buffered(1) to drop their redundant second buffer (v7x).
    grid_spec = pltpu.PrefetchScalarGridSpec(
        num_scalar_prefetch=0,
        # B is megacore-parallel; the L axis carries state and must stay
        # "arbitrary" (and innermost) so the lc==0 reset is correct.
        grid=(B, nL),
        in_specs=[
            pl.BlockSpec((None, tL, H), lambda b, lc: (b, lc, 0)),   # x
            pl.BlockSpec((N, H), inv),            # A_bar real
            pl.BlockSpec((N, H), inv),            # A_bar imag
            pl.BlockSpec((N, H), inv),            # A_bar^2 real
            pl.BlockSpec((N, H), inv),            # A_bar^2 imag
            pl.BlockSpec((N, H), inv),            # 2*C' real
            pl.BlockSpec((N, H), inv),            # 2*C' imag
            pl.BlockSpec((1, H), inv),            # D
            pl.BlockSpec((H, 2 * H), inv),        # fused GLU weight (bf16)
            pl.BlockSpec((1, 2 * H), inv),        # fused GLU bias
        ],
        out_specs=pl.BlockSpec((None, tL, H), lambda b, lc: (b, lc, 0)),
        scratch_shapes=[
            pltpu.VMEM((N, H), jnp.float32),      # SSM state (real)
            pltpu.VMEM((N, H), jnp.float32),      # SSM state (imag)
            pltpu.VMEM((tL, H), jnp.float32),     # per-chunk conv output
        ],
    )
    return pl.pallas_call(
        _s4_layer_kernel,
        out_shape=jax.ShapeDtypeStruct((B, L, H), x.dtype),
        grid_spec=grid_spec,
        compiler_params=pltpu.CompilerParams(
            dimension_semantics=("parallel", "arbitrary")),
        cost_estimate=cost,
    )(x, abar_re, abar_im, a2_re, a2_im, ck_re, ck_im, D, W_fused, bias)


# ----------------------------------------------------------------------------
# SSM kernel materialization for the reference path only (FFTConv check).
# ----------------------------------------------------------------------------
def ssm_kernel_from_params(abar_re, abar_im, ck_re, ck_im, L):
    def step(carry, _):
        p_re, p_im = carry
        k_l = jnp.sum(ck_re * p_re - ck_im * p_im, axis=0)     # (H,)
        n_re = p_re * abar_re - p_im * abar_im
        n_im = p_re * abar_im + p_im * abar_re
        return (n_re, n_im), k_l
    init = (jnp.ones_like(abar_re), jnp.zeros_like(abar_im))
    _, k = lax.scan(step, init, xs=None, length=L)
    return k                                                    # (L, H)


# ----------------------------------------------------------------------------
# Plain-JAX reference mirroring FFTConv's rfft/irfft path (+ same bf16 matmul)
# ----------------------------------------------------------------------------
def s4_layer_ref(x, k_ssm, D, W_fused, bias):
    B, L, H = x.shape
    n = 2 * L
    xt = jnp.transpose(x, (0, 2, 1))                            # (B, H, L)
    kf = jnp.fft.rfft(k_ssm.T, n=n)                             # (H, n//2+1)
    xf = jnp.fft.rfft(xt, n=n)
    y = jnp.fft.irfft(xf * kf[None], n=n)[..., :L]
    y = y + xt * D[0][None, :, None]
    y = jnp.transpose(y, (0, 2, 1))                             # (B, L, H)
    y = jax.nn.gelu(y, approximate=False)
    z = jnp.dot(y.astype(jnp.bfloat16), W_fused,
                preferred_element_type=jnp.float32) + bias
    return z[..., :H] * jax.nn.sigmoid(z[..., H:])


if __name__ == "__main__":
    # H is a multiple of 128 (lane-dense stores / GLU split); L is tiled into
    # chunks of tL=256 so grid-step overhead is amortized and the epilogue
    # matmul gets a (256,128)@(128,256) MXU shape.
    B, L, H, N = 2, 512, 128, 16
    tL = 256
    num_layers = 2

    key = jax.random.PRNGKey(0)
    key, kx = jax.random.split(key)
    x = jax.random.normal(kx, (B, L, H), dtype=jnp.float32)

    layers = []
    for _ in range(num_layers):
        key, k1, k2, k3, k4, k5, k6 = jax.random.split(key, 7)
        log_dt = (jnp.log(0.001)
                  + jax.random.uniform(k1, (H,), dtype=jnp.float32)
                  * (jnp.log(0.1) - jnp.log(0.001)))
        A_re = -0.5 * jnp.ones((H, N), jnp.float32)                 # S4D-Lin
        A_im = jnp.pi * jnp.broadcast_to(
            jnp.arange(N, dtype=jnp.float32), (H, N))
        C_re = (0.5 ** 0.5) * jax.random.normal(k2, (H, N), dtype=jnp.float32)
        C_im = (0.5 ** 0.5) * jax.random.normal(k3, (H, N), dtype=jnp.float32)
        D = jax.random.normal(k4, (1, H), dtype=jnp.float32)
        # torch nn.Linear(H, 2H): weight (2H, H), bias (2H,)
        W = jax.random.normal(k5, (2 * H, H), dtype=jnp.float32) / jnp.sqrt(H)
        bvec = jax.random.normal(k6, (2 * H,), dtype=jnp.float32) / jnp.sqrt(H)

        # ZOH discretization:  A_bar = exp(dt*A),  C' = C*(A_bar - 1)/A (B=1).
        dt = jnp.exp(log_dt)[:, None]
        dtA_re, dtA_im = dt * A_re, dt * A_im
        abar_re = jnp.exp(dtA_re) * jnp.cos(dtA_im)
        abar_im = jnp.exp(dtA_re) * jnp.sin(dtA_im)
        e_re, e_im = abar_re - 1.0, abar_im
        denom = A_re ** 2 + A_im ** 2
        w_re = (e_re * A_re + e_im * A_im) / denom
        w_im = (e_im * A_re - e_re * A_im) / denom
        ck_re = 2.0 * (C_re * w_re - C_im * w_im)     # fold the 2*Re(.) factor
        ck_im = 2.0 * (C_re * w_im + C_im * w_re)

        # (N, H) layout: H on the lane axis.
        abar_re_t = jnp.asarray(abar_re.T, jnp.float32)
        abar_im_t = jnp.asarray(abar_im.T, jnp.float32)
        ck_re_t = jnp.asarray(ck_re.T, jnp.float32)
        ck_im_t = jnp.asarray(ck_im.T, jnp.float32)

        # Fused GLU projection: z = y @ W.T, GLU splits [:H] / [H:].
        W_fused = W.T.astype(jnp.bfloat16)            # (H, 2H)
        bias = bvec[None, :].astype(jnp.float32)      # (1, 2H)

        layers.append((abar_re_t, abar_im_t, ck_re_t, ck_im_t, D, W_fused, bias))

    # Run the S4 stack: x -> layer_0 -> layer_1 -> ... (state discarded, as in
    # S4.forward).
    y = x
    y_ref = x
    for (ar, ai, cr, ci, D, W_fused, bias) in layers:
        k_ssm = ssm_kernel_from_params(ar, ai, cr, ci, L)       # ref only
        y = s4_layer_pallas(y, ar, ai, cr, ci, D, W_fused, bias, tL=tL)
        y_ref = s4_layer_ref(y_ref, k_ssm, D, W_fused, bias)

    y = jax.block_until_ready(y)
    err = float(jnp.max(jnp.abs(y - y_ref)))
    # Tolerance dominated by the (intentional) bf16 MXU operands and by the
    # scan-vs-FFT convolution ordering; both paths use f32 accumulation.
    assert err < 5e-2, f"Pallas kernel mismatch vs reference: max abs err = {err}"
    print("KERNEL_OK")
</pallas_src>

<mosaic_0001>
module attributes {stable_mosaic.version = 11 : i64} {
  func.func @_s4_layer_kernel(%arg0: i32, %arg1: i32, %arg2: memref<1x256x128xf32, #tpu.memory_space<vmem>>, %arg3: memref<16x128xf32, #tpu.memory_space<vmem>>, %arg4: memref<16x128xf32, #tpu.memory_space<vmem>>, %arg5: memref<16x128xf32, #tpu.memory_space<vmem>>, %arg6: memref<16x128xf32, #tpu.memory_space<vmem>>, %arg7: memref<16x128xf32, #tpu.memory_space<vmem>>, %arg8: memref<16x128xf32, #tpu.memory_space<vmem>>, %arg9: memref<1x128xf32, #tpu.memory_space<vmem>>, %arg10: memref<128x256xbf16, #tpu.memory_space<vmem>>, %arg11: memref<1x256xf32, #tpu.memory_space<vmem>>, %arg12: memref<1x256x128xf32, #tpu.memory_space<vmem>>, %arg13: memref<16x128xf32, #tpu.memory_space<vmem>>, %arg14: memref<16x128xf32, #tpu.memory_space<vmem>>, %arg15: memref<256x128xf32, #tpu.memory_space<vmem>>) attributes {dimension_semantics = [#tpu.dimension_semantics<parallel>, #tpu.dimension_semantics<arbitrary>], iteration_bounds = array<i64: 2, 2>, scalar_prefetch = 0 : i64, scratch_operands = 3 : i64, tpu.core_type = #tpu.core_type<tc>, window_params = [{transform_indices = @transform_0, window_bounds = array<i64: 1, 256, 128>}, {pipeline_mode = #tpu.pipeline_mode<synchronous>, transform_indices = @transform_1, window_bounds = array<i64: 16, 128>}, {pipeline_mode = #tpu.pipeline_mode<synchronous>, transform_indices = @transform_2, window_bounds = array<i64: 16, 128>}, {pipeline_mode = #tpu.pipeline_mode<synchronous>, transform_indices = @transform_3, window_bounds = array<i64: 16, 128>}, {pipeline_mode = #tpu.pipeline_mode<synchronous>, transform_indices = @transform_4, window_bounds = array<i64: 16, 128>}, {pipeline_mode = #tpu.pipeline_mode<synchronous>, transform_indices = @transform_5, window_bounds = array<i64: 16, 128>}, {pipeline_mode = #tpu.pipeline_mode<synchronous>, transform_indices = @transform_6, window_bounds = array<i64: 16, 128>}, {pipeline_mode = #tpu.pipeline_mode<synchronous>, transform_indices = @transform_7, window_bounds = array<i64: 1, 128>}, {pipeline_mode = #tpu.pipeline_mode<synchronous>, transform_indices = @transform_8, window_bounds = array<i64: 128, 256>}, {pipeline_mode = #tpu.pipeline_mode<synchronous>, transform_indices = @transform_9, window_bounds = array<i64: 1, 256>}, {transform_indices = @transform_10, window_bounds = array<i64: 1, 256, 128>}]} {
    %c0_i32 = arith.constant 0 : i32
    %0 = arith.cmpi eq, %arg1, %c0_i32 : i32
    %1 = arith.extui %0 : i1 to i32
    %c0_i32_0 = arith.constant 0 : i32
    %2 = arith.cmpi ne, %1, %c0_i32_0 : i32
    scf.if %2 {
      %cst_54 = arith.constant 0.000000e+00 : f32
      %81 = vector.broadcast %cst_54 : f32 to vector<16x128xf32>
      %c0_55 = arith.constant 0 : index
      %c0_56 = arith.constant 0 : index
      %82 = vector.load %arg13[%c0_55, %c0_56] : memref<16x128xf32, #tpu.memory_space<vmem>>, vector<16x128xf32>
      tpu.vector_store %arg13[%c0_55, %c0_56], %81 {strides = array<i32>} : memref<16x128xf32, #tpu.memory_space<vmem>>, vector<16x128xf32>,
      %cst_57 = arith.constant 0.000000e+00 : f32
      %83 = vector.broadcast %cst_57 : f32 to vector<16x128xf32>
      %c0_58 = arith.constant 0 : index
      %c0_59 = arith.constant 0 : index
      %84 = vector.load %arg14[%c0_58, %c0_59] : memref<16x128xf32, #tpu.memory_space<vmem>>, vector<16x128xf32>
      tpu.vector_store %arg14[%c0_58, %c0_59], %83 {strides = array<i32>} : memref<16x128xf32, #tpu.memory_space<vmem>>, vector<16x128xf32>,
    } else {
    }
    %c0 = arith.constant 0 : index
    %c0_1 = arith.constant 0 : index
    %3 = vector.load %arg3[%c0, %c0_1] : memref<16x128xf32, #tpu.memory_space<vmem>>, vector<16x128xf32>
    %c0_2 = arith.constant 0 : index
    %c0_3 = arith.constant 0 : index
    %4 = vector.load %arg4[%c0_2, %c0_3] : memref<16x128xf32, #tpu.memory_space<vmem>>, vector<16x128xf32>
    %c0_4 = arith.constant 0 : index
    %c0_5 = arith.constant 0 : index
    %5 = vector.load %arg5[%c0_4, %c0_5] : memref<16x128xf32, #tpu.memory_space<vmem>>, vector<16x128xf32>
    %c0_6 = arith.constant 0 : index
    %c0_7 = arith.constant 0 : index
    %6 = vector.load %arg6[%c0_6, %c0_7] : memref<16x128xf32, #tpu.memory_space<vmem>>, vector<16x128xf32>
    %c0_8 = arith.constant 0 : index
    %c0_9 = arith.constant 0 : index
    %7 = vector.load %arg7[%c0_8, %c0_9] : memref<16x128xf32, #tpu.memory_space<vmem>>, vector<16x128xf32>
    %c0_10 = arith.constant 0 : index
    %c0_11 = arith.constant 0 : index
    %8 = vector.load %arg8[%c0_10, %c0_11] : memref<16x128xf32, #tpu.memory_space<vmem>>, vector<16x128xf32>
    %c0_12 = arith.constant 0 : index
    %c0_13 = arith.constant 0 : index
    %9 = vector.load %arg13[%c0_12, %c0_13] : memref<16x128xf32, #tpu.memory_space<vmem>>, vector<16x128xf32>
    %c0_14 = arith.constant 0 : index
    %c0_15 = arith.constant 0 : index
    %10 = vector.load %arg14[%c0_14, %c0_15] : memref<16x128xf32, #tpu.memory_space<vmem>>, vector<16x128xf32>
    %c0_i32_16 = arith.constant 0 : i32
    %c32_i32 = arith.constant 32 : i32
    %11 = arith.addi %c0_i32_16, %c32_i32 : i32
    %c1_i32 = arith.constant 1 : i32
    %12:2 = scf.for %arg16 = %c0_i32_16 to %11 step %c1_i32 iter_args(%arg17 = %9, %arg18 = %10) -> (vector<16x128xf32>, vector<16x128xf32>)  : i32 {
      %c8_i32 = arith.constant 8 : i32
      %81 = arith.muli %arg16, %c8_i32 : i32
      %82 = tpu.assume_multiple %81, 8 : i32
      %c0_54 = arith.constant 0 : index
      %83 = arith.index_cast %82 : i32 to index
      %c0_55 = arith.constant 0 : index
      %84 = vector.load %arg2[%c0_54, %83, %c0_55] : memref<1x256x128xf32, #tpu.memory_space<vmem>>, vector<1x1x128xf32>
      %85 = vector.shape_cast %84 : vector<1x1x128xf32> to vector<1x128xf32>
      %c1_i32_56 = arith.constant 1 : i32
      %86 = arith.addi %82, %c1_i32_56 : i32
      %c0_57 = arith.constant 0 : index
      %87 = arith.index_cast %86 : i32 to index
      %c0_58 = arith.constant 0 : index
      %88 = vector.load %arg2[%c0_57, %87, %c0_58] : memref<1x256x128xf32, #tpu.memory_space<vmem>>, vector<1x1x128xf32>
      %89 = vector.shape_cast %88 : vector<1x1x128xf32> to vector<1x128xf32>
      %90 = arith.mulf %3, %arg17 : vector<16x128xf32>
      %91 = arith.mulf %4, %arg18 : vector<16x128xf32>
      %92 = arith.subf %90, %91 : vector<16x128xf32>
      %93 = vector.broadcast %85 : vector<1x128xf32> to vector<16x128xf32>
      %94 = arith.addf %92, %93 : vector<16x128xf32>
      %95 = arith.mulf %3, %arg18 : vector<16x128xf32>
      %96 = arith.mulf %4, %arg17 : vector<16x128xf32>
      %97 = arith.addf %95, %96 : vector<16x128xf32>
      %98 = arith.mulf %5, %arg17 : vector<16x128xf32>
      %99 = arith.mulf %6, %arg18 : vector<16x128xf32>
      %100 = arith.subf %98, %99 : vector<16x128xf32>
      %101 = vector.broadcast %85 : vector<1x128xf32> to vector<16x128xf32>
      %102 = arith.mulf %3, %101 : vector<16x128xf32>
      %103 = vector.broadcast %89 : vector<1x128xf32> to vector<16x128xf32>
      %104 = arith.addf %102, %103 : vector<16x128xf32>
      %105 = arith.addf %100, %104 : vector<16x128xf32>
      %106 = arith.mulf %5, %arg18 : vector<16x128xf32>
      %107 = arith.mulf %6, %arg17 : vector<16x128xf32>
      %108 = arith.addf %106, %107 : vector<16x128xf32>
      %109 = vector.broadcast %85 : vector<1x128xf32> to vector<16x128xf32>
      %110 = arith.mulf %4, %109 : vector<16x128xf32>
      %111 = arith.addf %108, %110 : vector<16x128xf32>
      %112 = arith.mulf %7, %94 : vector<16x128xf32>
      %113 = arith.mulf %8, %97 : vector<16x128xf32>
      %114 = arith.subf %112, %113 : vector<16x128xf32>
      %cst_59 = arith.constant dense<0.000000e+00> : vector<128xf32>
      %115 = vector.multi_reduction <add>, %114, %cst_59 [0] : vector<16x128xf32> to vector<128xf32>
      %116 = vector.shape_cast %115 : vector<128xf32> to vector<1x128xf32>
      %117 = arith.mulf %7, %105 : vector<16x128xf32>
      %118 = arith.mulf %8, %111 : vector<16x128xf32>
      %119 = arith.subf %117, %118 : vector<16x128xf32>
      %cst_60 = arith.constant dense<0.000000e+00> : vector<128xf32>
      %120 = vector.multi_reduction <add>, %119, %cst_60 [0] : vector<16x128xf32> to vector<128xf32>
      %121 = vector.shape_cast %120 : vector<128xf32> to vector<1x128xf32>
      %c2_i32 = arith.constant 2 : i32
      %122 = arith.addi %82, %c2_i32 : i32
      %c0_61 = arith.constant 0 : index
      %123 = arith.index_cast %122 : i32 to index
      %c0_62 = arith.constant 0 : index
      %124 = vector.load %arg2[%c0_61, %123, %c0_62] : memref<1x256x128xf32, #tpu.memory_space<vmem>>, vector<1x1x128xf32>
      %125 = vector.shape_cast %124 : vector<1x1x128xf32> to vector<1x128xf32>
      %c1_i32_63 = arith.constant 1 : i32
      %126 = arith.addi %122, %c1_i32_63 : i32
      %c0_64 = arith.constant 0 : index
      %127 = arith.index_cast %126 : i32 to index
      %c0_65 = arith.constant 0 : index
      %128 = vector.load %arg2[%c0_64, %127, %c0_65] : memref<1x256x128xf32, #tpu.memory_space<vmem>>, vector<1x1x128xf32>
      %129 = vector.shape_cast %128 : vector<1x1x128xf32> to vector<1x128xf32>
      %130 = vector.broadcast %89 : vector<1x128xf32> to vector<16x128xf32>
      %131 = arith.mulf %3, %130 : vector<16x128xf32>
      %132 = vector.broadcast %125 : vector<1x128xf32> to vector<16x128xf32>
      %133 = arith.addf %131, %132 : vector<16x128xf32>
      %134 = vector.broadcast %89 : vector<1x128xf32> to vector<16x128xf32>
      %135 = arith.mulf %4, %134 : vector<16x128xf32>
      %136 = vector.broadcast %125 : vector<1x128xf32> to vector<16x128xf32>
      %137 = arith.mulf %3, %136 : vector<16x128xf32>
      %138 = vector.broadcast %129 : vector<1x128xf32> to vector<16x128xf32>
      %139 = arith.addf %137, %138 : vector<16x128xf32>
      %140 = vector.broadcast %125 : vector<1x128xf32> to vector<16x128xf32>
      %141 = arith.mulf %4, %140 : vector<16x128xf32>
      %142 = arith.mulf %5, %94 : vector<16x128xf32>
      %143 = arith.mulf %6, %97 : vector<16x128xf32>
      %144 = arith.subf %142, %143 : vector<16x128xf32>
      %145 = arith.addf %144, %133 : vector<16x128xf32>
      %146 = arith.mulf %5, %97 : vector<16x128xf32>
      %147 = arith.mulf %6, %94 : vector<16x128xf32>
      %148 = arith.addf %146, %147 : vector<16x128xf32>
      %149 = arith.addf %148, %135 : vector<16x128xf32>
      %150 = arith.mulf %5, %105 : vector<16x128xf32>
      %151 = arith.mulf %6, %111 : vector<16x128xf32>
      %152 = arith.subf %150, %151 : vector<16x128xf32>
      %153 = arith.addf %152, %139 : vector<16x128xf32>
      %154 = arith.mulf %5, %111 : vector<16x128xf32>
      %155 = arith.mulf %6, %105 : vector<16x128xf32>
      %156 = arith.addf %154, %155 : vector<16x128xf32>
      %157 = arith.addf %156, %141 : vector<16x128xf32>
      %158 = arith.mulf %7, %145 : vector<16x128xf32>
      %159 = arith.mulf %8, %149 : vector<16x128xf32>
      %160 = arith.subf %158, %159 : vector<16x128xf32>
      %cst_66 = arith.constant dense<0.000000e+00> : vector<128xf32>
      %161 = vector.multi_reduction <add>, %160, %cst_66 [0] : vector<16x128xf32> to vector<128xf32>
      %162 = vector.shape_cast %161 : vector<128xf32> to vector<1x128xf32>
      %163 = arith.mulf %7, %153 : vector<16x128xf32>
      %164 = arith.mulf %8, %157 : vector<16x128xf32>
      %165 = arith.subf %163, %164 : vector<16x128xf32>
      %cst_67 = arith.constant dense<0.000000e+00> : vector<128xf32>
      %166 = vector.multi_reduction <add>, %165, %cst_67 [0] : vector<16x128xf32> to vector<128xf32>
      %167 = vector.shape_cast %166 : vector<128xf32> to vector<1x128xf32>
      %c4_i32 = arith.constant 4 : i32
      %168 = arith.addi %82, %c4_i32 : i32
      %c0_68 = arith.constant 0 : index
      %169 = arith.index_cast %168 : i32 to index
      %c0_69 = arith.constant 0 : index
      %170 = vector.load %arg2[%c0_68, %169, %c0_69] : memref<1x256x128xf32, #tpu.memory_space<vmem>>, vector<1x1x128xf32>
      %171 = vector.shape_cast %170 : vector<1x1x128xf32> to vector<1x128xf32>
      %c1_i32_70 = arith.constant 1 : i32
      %172 = arith.addi %168, %c1_i32_70 : i32
      %c0_71 = arith.constant 0 : index
      %173 = arith.index_cast %172 : i32 to index
      %c0_72 = arith.constant 0 : index
      %174 = vector.load %arg2[%c0_71, %173, %c0_72] : memref<1x256x128xf32, #tpu.memory_space<vmem>>, vector<1x1x128xf32>
      %175 = vector.shape_cast %174 : vector<1x1x128xf32> to vector<1x128xf32>
      %176 = vector.broadcast %129 : vector<1x128xf32> to vector<16x128xf32>
      %177 = arith.mulf %3, %176 : vector<16x128xf32>
      %178 = vector.broadcast %171 : vector<1x128xf32> to vector<16x128xf32>
      %179 = arith.addf %177, %178 : vector<16x128xf32>
      %180 = vector.broadcast %129 : vector<1x128xf32> to vector<16x128xf32>
      %181 = arith.mulf %4, %180 : vector<16x128xf32>
      %182 = vector.broadcast %171 : vector<1x128xf32> to vector<16x128xf32>
      %183 = arith.mulf %3, %182 : vector<16x128xf32>
      %184 = vector.broadcast %175 : vector<1x128xf32> to vector<16x128xf32>
      %185 = arith.addf %183, %184 : vector<16x128xf32>
      %186 = vector.broadcast %171 : vector<1x128xf32> to vector<16x128xf32>
      %187 = arith.mulf %4, %186 : vector<16x128xf32>
      %188 = arith.mulf %5, %145 : vector<16x128xf32>
      %189 = arith.mulf %6, %149 : vector<16x128xf32>
      %190 = arith.subf %188, %189 : vector<16x128xf32>
      %191 = arith.addf %190, %179 : vector<16x128xf32>
      %192 = arith.mulf %5, %149 : vector<16x128xf32>
      %193 = arith.mulf %6, %145 : vector<16x128xf32>
      %194 = arith.addf %192, %193 : vector<16x128xf32>
      %195 = arith.addf %194, %181 : vector<16x128xf32>
      %196 = arith.mulf %5, %153 : vector<16x128xf32>
      %197 = arith.mulf %6, %157 : vector<16x128xf32>
      %198 = arith.subf %196, %197 : vector<16x128xf32>
      %199 = arith.addf %198, %185 : vector<16x128xf32>
      %200 = arith.mulf %5, %157 : vector<16x128xf32>
      %201 = arith.mulf %6, %153 : vector<16x128xf32>
      %202 = arith.addf %200, %201 : vector<16x128xf32>
      %203 = arith.addf %202, %187 : vector<16x128xf32>
      %204 = arith.mulf %7, %191 : vector<16x128xf32>
      %205 = arith.mulf %8, %195 : vector<16x128xf32>
      %206 = arith.subf %204, %205 : vector<16x128xf32>
      %cst_73 = arith.constant dense<0.000000e+00> : vector<128xf32>
      %207 = vector.multi_reduction <add>, %206, %cst_73 [0] : vector<16x128xf32> to vector<128xf32>
      %208 = vector.shape_cast %207 : vector<128xf32> to vector<1x128xf32>
      %209 = arith.mulf %7, %199 : vector<16x128xf32>
      %210 = arith.mulf %8, %203 : vector<16x128xf32>
      %211 = arith.subf %209, %210 : vector<16x128xf32>
      %cst_74 = arith.constant dense<0.000000e+00> : vector<128xf32>
      %212 = vector.multi_reduction <add>, %211, %cst_74 [0] : vector<16x128xf32> to vector<128xf32>
      %213 = vector.shape_cast %212 : vector<128xf32> to vector<1x128xf32>
      %c6_i32 = arith.constant 6 : i32
      %214 = arith.addi %82, %c6_i32 : i32
      %c0_75 = arith.constant 0 : index
      %215 = arith.index_cast %214 : i32 to index
      %c0_76 = arith.constant 0 : index
      %216 = vector.load %arg2[%c0_75, %215, %c0_76] : memref<1x256x128xf32, #tpu.memory_space<vmem>>, vector<1x1x128xf32>
      %217 = vector.shape_cast %216 : vector<1x1x128xf32> to vector<1x128xf32>
      %c1_i32_77 = arith.constant 1 : i32
      %218 = arith.addi %214, %c1_i32_77 : i32
      %c0_78 = arith.constant 0 : index
      %219 = arith.index_cast %218 : i32 to index
      %c0_79 = arith.constant 0 : index
      %220 = vector.load %arg2[%c0_78, %219, %c0_79] : memref<1x256x128xf32, #tpu.memory_space<vmem>>, vector<1x1x128xf32>
      %221 = vector.shape_cast %220 : vector<1x1x128xf32> to vector<1x128xf32>
      %222 = vector.broadcast %175 : vector<1x128xf32> to vector<16x128xf32>
      %223 = arith.mulf %3, %222 : vector<16x128xf32>
      %224 = vector.broadcast %217 : vector<1x128xf32> to vector<16x128xf32>
      %225 = arith.addf %223, %224 : vector<16x128xf32>
      %226 = vector.broadcast %175 : vector<1x128xf32> to vector<16x128xf32>
      %227 = arith.mulf %4, %226 : vector<16x128xf32>
      %228 = vector.broadcast %217 : vector<1x128xf32> to vector<16x128xf32>
      %229 = arith.mulf %3, %228 : vector<16x128xf32>
      %230 = vector.broadcast %221 : vector<1x128xf32> to vector<16x128xf32>
      %231 = arith.addf %229, %230 : vector<16x128xf32>
      %232 = vector.broadcast %217 : vector<1x128xf32> to vector<16x128xf32>
      %233 = arith.mulf %4, %232 : vector<16x128xf32>
      %234 = arith.mulf %5, %191 : vector<16x128xf32>
      %235 = arith.mulf %6, %195 : vector<16x128xf32>
      %236 = arith.subf %234, %235 : vector<16x128xf32>
      %237 = arith.addf %236, %225 : vector<16x128xf32>
      %238 = arith.mulf %5, %195 : vector<16x128xf32>
      %239 = arith.mulf %6, %191 : vector<16x128xf32>
      %240 = arith.addf %238, %239 : vector<16x128xf32>
      %241 = arith.addf %240, %227 : vector<16x128xf32>
      %242 = arith.mulf %5, %199 : vector<16x128xf32>
      %243 = arith.mulf %6, %203 : vector<16x128xf32>
      %244 = arith.subf %242, %243 : vector<16x128xf32>
      %245 = arith.addf %244, %231 : vector<16x128xf32>
      %246 = arith.mulf %5, %203 : vector<16x128xf32>
      %247 = arith.mulf %6, %199 : vector<16x128xf32>
      %248 = arith.addf %246, %247 : vector<16x128xf32>
      %249 = arith.addf %248, %233 : vector<16x128xf32>
      %250 = arith.mulf %7, %237 : vector<16x128xf32>
      %251 = arith.mulf %8, %241 : vector<16x128xf32>
      %252 = arith.subf %250, %251 : vector<16x128xf32>
      %cst_80 = arith.constant dense<0.000000e+00> : vector<128xf32>
      %253 = vector.multi_reduction <add>, %252, %cst_80 [0] : vector<16x128xf32> to vector<128xf32>
      %254 = vector.shape_cast %253 : vector<128xf32> to vector<1x128xf32>
      %255 = arith.mulf %7, %245 : vector<16x128xf32>
      %256 = arith.mulf %8, %249 : vector<16x128xf32>
      %257 = arith.subf %255, %256 : vector<16x128xf32>
      %cst_81 = arith.constant dense<0.000000e+00> : vector<128xf32>
      %258 = vector.multi_reduction <add>, %257, %cst_81 [0] : vector<16x128xf32> to vector<128xf32>
      %259 = vector.shape_cast %258 : vector<128xf32> to vector<1x128xf32>
      %260 = tpu.concatenate %116, %121, %162, %167, %208, %213, %254, %259 in 0 : vector<1x128xf32>, vector<1x128xf32>, vector<1x128xf32>, vector<1x128xf32>, vector<1x128xf32>, vector<1x128xf32>, vector<1x128xf32>, vector<1x128xf32> -> vector<8x128xf32>
      %261 = arith.index_cast %82 : i32 to index
      %c0_82 = arith.constant 0 : index
      %262 = vector.load %arg15[%261, %c0_82] : memref<256x128xf32, #tpu.memory_space<vmem>>, vector<8x128xf32>
      tpu.vector_store %arg15[%261, %c0_82], %260 {strides = array<i32>} : memref<256x128xf32, #tpu.memory_space<vmem>>, vector<8x128xf32>,
      scf.yield %245, %249 : vector<16x128xf32>, vector<16x128xf32>
    }
    %c32_i32_17 = arith.constant 32 : i32
    %c0_18 = arith.constant 0 : index
    %c0_19 = arith.constant 0 : index
    %13 = vector.load %arg13[%c0_18, %c0_19] : memref<16x128xf32, #tpu.memory_space<vmem>>, vector<16x128xf32>
    tpu.vector_store %arg13[%c0_18, %c0_19], %12#0 {strides = array<i32>} : memref<16x128xf32, #tpu.memory_space<vmem>>, vector<16x128xf32>,
    %c0_20 = arith.constant 0 : index
    %c0_21 = arith.constant 0 : index
    %14 = vector.load %arg14[%c0_20, %c0_21] : memref<16x128xf32, #tpu.memory_space<vmem>>, vector<16x128xf32>
    tpu.vector_store %arg14[%c0_20, %c0_21], %12#1 {strides = array<i32>} : memref<16x128xf32, #tpu.memory_space<vmem>>, vector<16x128xf32>,
    %c0_22 = arith.constant 0 : index
    %c0_23 = arith.constant 0 : index
    %c0_24 = arith.constant 0 : index
    %15 = vector.load %arg2[%c0_22, %c0_23, %c0_24] : memref<1x256x128xf32, #tpu.memory_space<vmem>>, vector<1x256x128xf32>
    %16 = vector.shape_cast %15 : vector<1x256x128xf32> to vector<256x128xf32>
    %c0_25 = arith.constant 0 : index
    %c0_26 = arith.constant 0 : index
    %17 = vector.load %arg15[%c0_25, %c0_26] : memref<256x128xf32, #tpu.memory_space<vmem>>, vector<256x128xf32>
    %c0_27 = arith.constant 0 : index
    %c0_28 = arith.constant 0 : index
    %18 = vector.load %arg9[%c0_27, %c0_28] : memref<1x128xf32, #tpu.memory_space<vmem>>, vector<1x128xf32>
    %19 = vector.broadcast %18 : vector<1x128xf32> to vector<256x128xf32>
    %20 = arith.mulf %16, %19 : vector<256x128xf32>
    %21 = arith.addf %17, %20 : vector<256x128xf32>
    %cst = arith.constant 5.000000e-01 : f32
    %22 = vector.broadcast %cst : f32 to vector<256x128xf32>
    %23 = arith.mulf %22, %21 : vector<256x128xf32>
    %cst_29 = arith.constant 0.707106769 : f32
    %24 = vector.broadcast %cst_29 : f32 to vector<256x128xf32>
    %25 = arith.mulf %21, %24 : vector<256x128xf32>
    %26 = math.absf %25 : vector<256x128xf32>
    %cst_30 = arith.constant 0.327591091 : f32
    %27 = vector.broadcast %cst_30 : f32 to vector<256x128xf32>
    %28 = arith.mulf %27, %26 : vector<256x128xf32>
    %cst_31 = arith.constant 1.000000e+00 : f32
    %29 = vector.broadcast %cst_31 : f32 to vector<256x128xf32>
    %30 = arith.addf %29, %28 : vector<256x128xf32>
    %cst_32 = arith.constant 1.000000e+00 : f32
    %31 = vector.broadcast %cst_32 : f32 to vector<256x128xf32>
    %32 = arith.divf %31, %30 : vector<256x128xf32>
    %cst_33 = arith.constant 1.06140542 : f32
    %33 = vector.broadcast %cst_33 : f32 to vector<256x128xf32>
    %34 = arith.mulf %32, %33 : vector<256x128xf32>
    %cst_34 = arith.constant -1.45315206 : f32
    %35 = vector.broadcast %cst_34 : f32 to vector<256x128xf32>
    %36 = arith.addf %35, %34 : vector<256x128xf32>
    %37 = arith.mulf %32, %36 : vector<256x128xf32>
    %cst_35 = arith.constant 1.42141378 : f32
    %38 = vector.broadcast %cst_35 : f32 to vector<256x128xf32>
    %39 = arith.addf %38, %37 : vector<256x128xf32>
    %40 = arith.mulf %32, %39 : vector<256x128xf32>
    %cst_36 = arith.constant -0.284496725 : f32
    %41 = vector.broadcast %cst_36 : f32 to vector<256x128xf32>
    %42 = arith.addf %41, %40 : vector<256x128xf32>
    %43 = arith.mulf %32, %42 : vector<256x128xf32>
    %cst_37 = arith.constant 0.254829586 : f32
    %44 = vector.broadcast %cst_37 : f32 to vector<256x128xf32>
    %45 = arith.addf %44, %43 : vector<256x128xf32>
    %46 = arith.mulf %32, %45 : vector<256x128xf32>
    %cst_38 = arith.constant 0.000000e+00 : f32
    %47 = vector.broadcast %cst_38 : f32 to vector<256x128xf32>
    %48 = arith.subf %47, %26 : vector<256x128xf32>
    %49 = arith.mulf %48, %26 : vector<256x128xf32>
    %50 = math.exp %49 : vector<256x128xf32>
    %51 = arith.mulf %46, %50 : vector<256x128xf32>
    %cst_39 = arith.constant 1.000000e+00 : f32
    %52 = vector.broadcast %cst_39 : f32 to vector<256x128xf32>
    %53 = arith.subf %52, %51 : vector<256x128xf32>
    %cst_40 = arith.constant 0.000000e+00 : f32
    %54 = vector.broadcast %cst_40 : f32 to vector<256x128xf32>
    %55 = arith.cmpf olt, %25, %54 : vector<256x128xf32>
    %cst_41 = arith.constant 0.000000e+00 : f32
    %56 = vector.broadcast %cst_41 : f32 to vector<256x128xf32>
    %57 = arith.subf %56, %53 : vector<256x128xf32>
    %58 = arith.select %55, %57, %53 : vector<256x128xi1>, vector<256x128xf32>
    %cst_42 = arith.constant 1.000000e+00 : f32
    %59 = vector.broadcast %cst_42 : f32 to vector<256x128xf32>
    %60 = arith.addf %59, %58 : vector<256x128xf32>
    %61 = arith.mulf %23, %60 : vector<256x128xf32>
    %62 = arith.truncf %61 : vector<256x128xf32> to vector<256x128xbf16>
    %c0_43 = arith.constant 0 : index
    %c0_44 = arith.constant 0 : index
    %63 = vector.load %arg10[%c0_43, %c0_44] : memref<128x256xbf16, #tpu.memory_space<vmem>>, vector<128x256xbf16>
    %cst_45 = arith.constant dense<0.000000e+00> : vector<256x256xf32>
    %64 = tpu.matmul %62, %63, %cst_45 {dimension_numbers = #tpu.dot_dimension_numbers<[1], [0], [0], [1], [0, 0, 1, 1], [], []>} : vector<256x128xbf16>, vector<128x256xbf16>, vector<256x256xf32> -> vector<256x256xf32>
    %c0_46 = arith.constant 0 : index
    %c0_47 = arith.constant 0 : index
    %65 = vector.load %arg11[%c0_46, %c0_47] : memref<1x256xf32, #tpu.memory_space<vmem>>, vector<1x256xf32>
    %66 = vector.broadcast %65 : vector<1x256xf32> to vector<256x256xf32>
    %67 = arith.addf %64, %66 : vector<256x256xf32>
    %68 = vector.extract_strided_slice %67 {offsets = [0, 0], sizes = [256, 128], strides = [1, 1]} : vector<256x256xf32> to vector<256x128xf32>
    %69 = vector.extract_strided_slice %67 {offsets = [0, 128], sizes = [256, 128], strides = [1, 1]} : vector<256x256xf32> to vector<256x128xf32>
    %cst_48 = arith.constant 0.000000e+00 : f32
    %70 = vector.broadcast %cst_48 : f32 to vector<256x128xf32>
    %71 = arith.subf %70, %69 : vector<256x128xf32>
    %72 = math.exp %71 : vector<256x128xf32>
    %cst_49 = arith.constant 1.000000e+00 : f32
    %73 = vector.broadcast %cst_49 : f32 to vector<256x128xf32>
    %74 = arith.addf %73, %72 : vector<256x128xf32>
    %cst_50 = arith.constant 1.000000e+00 : f32
    %75 = vector.broadcast %cst_50 : f32 to vector<256x128xf32>
    %76 = arith.divf %75, %74 : vector<256x128xf32>
    %77 = arith.mulf %68, %76 : vector<256x128xf32>
    %c0_51 = arith.constant 0 : index
    %c0_52 = arith.constant 0 : index
    %c0_53 = arith.constant 0 : index
    %78 = vector.load %arg12[%c0_51, %c0_52, %c0_53] : memref<1x256x128xf32, #tpu.memory_space<vmem>>, vector<1x256x128xf32>
    %79 = vector.shape_cast %78 : vector<1x256x128xf32> to vector<256x128xf32>
    %80 = vector.shape_cast %77 : vector<256x128xf32> to vector<1x256x128xf32>
    tpu.vector_store %arg12[%c0_51, %c0_52, %c0_53], %80 {strides = array<i32>} : memref<1x256x128xf32, #tpu.memory_space<vmem>>, vector<1x256x128xf32>,
    return
  }
  func.func @transform_0(%arg0: i32, %arg1: i32) -> (i32, i32, i32) {
    %c0_i32 = arith.constant 0 : i32
    %c0_i32_0 = arith.constant 0 : i32
    return %arg0, %arg1, %c0_i32 : i32, i32, i32
  }
  func.func @transform_1(%arg0: i32, %arg1: i32) -> (i32, i32) {
    %c0_i32 = arith.constant 0 : i32
    %c0_i32_0 = arith.constant 0 : i32
    %c0_i32_1 = arith.constant 0 : i32
    return %c0_i32, %c0_i32_0 : i32, i32
  }
  func.func @transform_2(%arg0: i32, %arg1: i32) -> (i32, i32) {
    %c0_i32 = arith.constant 0 : i32
    %c0_i32_0 = arith.constant 0 : i32
    %c0_i32_1 = arith.constant 0 : i32
    return %c0_i32, %c0_i32_0 : i32, i32
  }
  func.func @transform_3(%arg0: i32, %arg1: i32) -> (i32, i32) {
    %c0_i32 = arith.constant 0 : i32
    %c0_i32_0 = arith.constant 0 : i32
    %c0_i32_1 = arith.constant 0 : i32
    return %c0_i32, %c0_i32_0 : i32, i32
  }
  func.func @transform_4(%arg0: i32, %arg1: i32) -> (i32, i32) {
    %c0_i32 = arith.constant 0 : i32
    %c0_i32_0 = arith.constant 0 : i32
    %c0_i32_1 = arith.constant 0 : i32
    return %c0_i32, %c0_i32_0 : i32, i32
  }
  func.func @transform_5(%arg0: i32, %arg1: i32) -> (i32, i32) {
    %c0_i32 = arith.constant 0 : i32
    %c0_i32_0 = arith.constant 0 : i32
    %c0_i32_1 = arith.constant 0 : i32
    return %c0_i32, %c0_i32_0 : i32, i32
  }
  func.func @transform_6(%arg0: i32, %arg1: i32) -> (i32, i32) {
    %c0_i32 = arith.constant 0 : i32
    %c0_i32_0 = arith.constant 0 : i32
    %c0_i32_1 = arith.constant 0 : i32
    return %c0_i32, %c0_i32_0 : i32, i32
  }
  func.func @transform_7(%arg0: i32, %arg1: i32) -> (i32, i32) {
    %c0_i32 = arith.constant 0 : i32
    %c0_i32_0 = arith.constant 0 : i32
    %c0_i32_1 = arith.constant 0 : i32
    return %c0_i32, %c0_i32_0 : i32, i32
  }
  func.func @transform_8(%arg0: i32, %arg1: i32) -> (i32, i32) {
    %c0_i32 = arith.constant 0 : i32
    %c0_i32_0 = arith.constant 0 : i32
    %c0_i32_1 = arith.constant 0 : i32
    return %c0_i32, %c0_i32_0 : i32, i32
  }
  func.func @transform_9(%arg0: i32, %arg1: i32) -> (i32, i32) {
    %c0_i32 = arith.constant 0 : i32
    %c0_i32_0 = arith.constant 0 : i32
    %c0_i32_1 = arith.constant 0 : i32
    return %c0_i32, %c0_i32_0 : i32, i32
  }
  func.func @transform_10(%arg0: i32, %arg1: i32) -> (i32, i32, i32) {
    %c0_i32 = arith.constant 0 : i32
    %c0_i32_0 = arith.constant 0 : i32
    return %arg0, %arg1, %c0_i32 : i32, i32, i32
  }
}

</mosaic_0001>

<llo_original>
// kernel: tpu_custom_call.1
$region0: #{tpu_custom_call.1}
  #allocation0 [shape = 'u32[]', space=smem, size = 0x4, offset = 0x4, fixed_abs, tag = 'smem constant byte address 0x4 - core index']
  #allocation1 [shape = 'u32[144,128]{1,0:T(1,128)}', space=vmem, size = 0x12000, scoped, tag = 'internal scratch']
  #allocation2 [shape = 'f32[16,128]{1,0:T(8,128)}', space=vmem, size = 0x2000, scoped, tag = 'scratch operand']
  #allocation3 [shape = 'f32[16,128]{1,0:T(8,128)}', space=vmem, size = 0x2000, scoped, tag = 'scratch operand']
  #allocation4 [shape = 'f32[256,128]{1,0:T(8,128)}', space=vmem, size = 0x20000, scoped, tag = 'scratch operand']
  %s0 = inlined_call_operand.hbm [shape: f32[2,512,128], index: 0, kind: input, shape index: {}]
  %s1 = inlined_call_operand.hbm [shape: f32[16,128], index: 1, kind: input, shape index: {}]
  %s2 = inlined_call_operand.hbm [shape: f32[16,128], index: 2, kind: input, shape index: {}]
  %s3 = inlined_call_operand.hbm [shape: f32[16,128], index: 3, kind: input, shape index: {}]
  %s4 = inlined_call_operand.hbm [shape: f32[16,128], index: 4, kind: input, shape index: {}]
  %s5 = inlined_call_operand.vmem [shape: f32[16,128], index: 5, kind: input, shape index: {}]
  %s6 = inlined_call_operand.hbm [shape: f32[16,128], index: 6, kind: input, shape index: {}]
  %s7 = inlined_call_operand.vmem [shape: f32[1,128], index: 7, kind: input, shape index: {}]
  %s8 = inlined_call_operand.hbm [shape: bf16[128,256], index: 8, kind: input, shape index: {}]
  %s9 = inlined_call_operand.vmem [shape: f32[1,256], index: 9, kind: input, shape index: {}]
  %s10 = inlined_call_operand.hbm [shape: f32[2,512,128], index: 10, kind: output, shape index: {}]
  %s11 = sld [smem:[#allocation0]]
  $region112: #{tpu_custom_call.1} parent=0
    _
  %s13 = ssub.s32 1, %s11
  %s14 = scalar_select 0, %s13, %s11
  $region1: #{tpu_custom_call.1} parent=0
    #allocation5 [shape = 'u8[262144]{0}', space=vmem, size = 0x40000, scoped, tag = 'input window, operand 0']
    #allocation6 [shape = 's32[2]{0}', space=sflag, size = 0x8, scoped, tag = 'scoped memory for tpu_custom_call.1']
    #allocation7 [shape = 's32[2]{0}', space=sflag, size = 0x8, scoped, tag = 'scoped memory for tpu_custom_call.1']
    #allocation8 [shape = 'u8[8192]{0}', space=vmem, size = 0x2000, scoped, tag = 'input window, operand 1, single buffered']
    #allocation9 [shape = 's32[1]{0}', space=sflag, size = 0x4, scoped, tag = 'scoped memory for tpu_custom_call.1']
    #allocation10 [shape = 'u8[8192]{0}', space=vmem, size = 0x2000, scoped, tag = 'input window, operand 2, single buffered']
    #allocation11 [shape = 'u8[8192]{0}', space=vmem, size = 0x2000, scoped, tag = 'input window, operand 3, single buffered']
    #allocation12 [shape = 's32[1]{0}', space=sflag, size = 0x4, scoped, tag = 'scoped memory for tpu_custom_call.1']
    #allocation13 [shape = 'u8[8192]{0}', space=vmem, size = 0x2000, scoped, tag = 'input window, operand 4, single buffered']
    #allocation14 [shape = 'u8[8192]{0}', space=vmem, size = 0x2000, scoped, tag = 'input window, operand 6, single buffered']
    #allocation15 [shape = 's32[1]{0}', space=sflag, size = 0x4, scoped, tag = 'scoped memory for tpu_custom_call.1']
    #allocation16 [shape = 'u8[65536]{0}', space=vmem, size = 0x10000, scoped, tag = 'input window, operand 8, single buffered']
    #allocation17 [shape = 'u8[262144]{0}', space=vmem, size = 0x40000, scoped, tag = 'output window, operand 0']
    %15 = vsyncpa [#allocation6], 0
    %s16 = scalar_lea.sflag [#allocation6], 1
    %17 = vsyncpa %s16, 0
    %18 = vsyncpa [#allocation9], 0
    %19 = vsyncpa [#allocation12], 0
    %20 = vsyncpa [#allocation15], 0
    %21 = vsyncpa [#allocation7], 0
    %s22 = scalar_lea.sflag [#allocation7], 1
    %23 = vsyncpa %s22, 0
    loop: start=0, step=1, limit=6
    $region2: #{tpu_custom_call.1} parent=1 // loop_pre_header
      _
    $region3: #{tpu_custom_call.1} parent=1 // loop_header
      %s25 = sphi 0, %s29
      %p26 = scmp.ge.s32.totalorder %s25, 6
      %s32 = sphi 0, %s44
      %s33 = sphi 0, %s40
      %s34 = sphi 0, %s32
      %s35 = sphi 0, %s33
      %s36 = sphi 0, %s34
      %s37 = sphi 0, %s35
      %s49 = sphi 0, %s51
      %s52 = sphi 0, %s49
      %s53 = sphi 0, %s52
      %s69 = sphi 0, %s53
      %s73 = sphi 0, %s73
      %s75 = sphi 0, %s73
      %s76 = sphi 0, %s75
      %s90 = sphi 0, %s76
      %s94 = sphi 0, %s94
      %s96 = sphi 0, %s94
      %s97 = sphi 0, %s96
      %s111 = sphi 0, %s97
      %s115 = sphi 0, %s115
      %s117 = sphi 0, %s115
      %s118 = sphi 0, %s117
      %s132 = sphi 0, %s118
      %s136 = sphi 0, %s136
      %s138 = sphi 0, %s136
      %s139 = sphi 0, %s138
      %s153 = sphi 0, %s139
      %s157 = sphi 0, %s157
      %s159 = sphi 0, %s157
      %s160 = sphi 0, %s159
      %s174 = sphi 0, %s160
      %s178 = sphi 0, %s178
      %s180 = sphi 0, %s178
      %s181 = sphi 0, %s180
      %s195 = sphi 0, %s181
      %s199 = sphi 0, %s199
      %s201 = sphi 0, %s199
      %s202 = sphi 0, %s201
      %s216 = sphi 0, %s202
      %s220 = sphi 0, %s220
      %s222 = sphi 0, %s220
      %s223 = sphi 0, %s222
      %s237 = sphi 0, %s223
      %s241 = sphi 0, %s241
      %s243 = sphi 0, %s241
      %s244 = sphi 0, %s243
      %s258 = sphi 0, %s244
      %s266 = sphi 0, %s268
      %s269 = sphi 0, %s266
      %s270 = sphi 0, %s269
      %s286 = sphi 0, %s270
    $region4: #{tpu_custom_call.1} parent=1 // loop_header_branch
      %28 = sbr.rel (%p26) target = $region8
    $region5: #{tpu_custom_call.1} parent=1 // loop_body
      %s30 = ssub.s32 %s25, 1
      %s31 = ssub.s32 %s25, 2
      %s38 = sadd.s32 1, %s33
      %p39 = scmp.ge.s32.totalorder %s38, 2
      %s40 = scalar_select %p39, 0, %s38
      %s41 = sadd.s32 1, %s32
      %s42 = scalar_select %p39, %s41, %s32
      %p43 = scmp.ge.s32.totalorder %s42, 2
      %s44 = scalar_select %p43, 0, %s42
      %s45 = ssub.s32 %s32, %s44
      %s46 = ssub.s32 %s33, %s40
      %s47 = sor.u32 %s45, %s46
      %p48 = scmp.eq.s32.totalorder %s47, 0
      %s50 = sadd.s32 %s49, 1
      %s51 = scalar_select %p48, %s49, %s50
      %p54 = pneg %p48
      %p55 = scmp.eq.s32.totalorder %s25, 3
      %p56 = por %p54, %p55
      %p57 = scmp.ne.s32.totalorder %s49, %s52
      %p58 = scmp.eq.s32.totalorder %s25, 0
      %p59 = por %p57, %p58
      %p60 = scmp.ne.s32.totalorder %s49, %s52
      %p61 = scmp.eq.s32.totalorder %s30, 3
      %p62 = por %p60, %p61
      %p63 = scmp.ne.s32.totalorder %s52, %s53
      %p64 = scmp.eq.s32.totalorder %s30, 0
      %p65 = por %p63, %p64
      %p66 = scmp.ne.s32.totalorder %s52, %s53
      %p67 = scmp.eq.s32.totalorder %s31, 3
      %p68 = por %p66, %p67
      %p70 = scmp.ne.s32.totalorder %s53, %s69
      %p71 = scmp.eq.s32.totalorder %s31, 0
      %p72 = por %p70, %p71
      %s74 = sadd.s32 %s73, 1
      %p77 = scmp.eq.s32.totalorder %s25, 3
      %p78 = scmp.ne.s32.totalorder %s73, %s75
      %p79 = scmp.eq.s32.totalorder %s25, 0
      %p80 = por %p78, %p79
      %p81 = scmp.ne.s32.totalorder %s73, %s75
      %p82 = scmp.eq.s32.totalorder %s30, 3
      %p83 = por %p81, %p82
      %p84 = scmp.ne.s32.totalorder %s75, %s76
      %p85 = scmp.eq.s32.totalorder %s30, 0
      %p86 = por %p84, %p85
      %p87 = scmp.ne.s32.totalorder %s75, %s76
      %p88 = scmp.eq.s32.totalorder %s31, 3
      %p89 = por %p87, %p88
      %p91 = scmp.ne.s32.totalorder %s76, %s90
      %p92 = scmp.eq.s32.totalorder %s31, 0
      %p93 = por %p91, %p92
      %s95 = sadd.s32 %s94, 1
      %p98 = scmp.eq.s32.totalorder %s25, 3
      %p99 = scmp.ne.s32.totalorder %s94, %s96
      %p100 = scmp.eq.s32.totalorder %s25, 0
      %p101 = por %p99, %p100
      %p102 = scmp.ne.s32.totalorder %s94, %s96
      %p103 = scmp.eq.s32.totalorder %s30, 3
      %p104 = por %p102, %p103
      %p105 = scmp.ne.s32.totalorder %s96, %s97
      %p106 = scmp.eq.s32.totalorder %s30, 0
      %p107 = por %p105, %p106
      %p108 = scmp.ne.s32.totalorder %s96, %s97
      %p109 = scmp.eq.s32.totalorder %s31, 3
      %p110 = por %p108, %p109
      %p112 = scmp.ne.s32.totalorder %s97, %s111
      %p113 = scmp.eq.s32.totalorder %s31, 0
      %p114 = por %p112, %p113
      %s116 = sadd.s32 %s115, 1
      %p119 = scmp.eq.s32.totalorder %s25, 3
      %p120 = scmp.ne.s32.totalorder %s115, %s117
      %p121 = scmp.eq.s32.totalorder %s25, 0
      %p122 = por %p120, %p121
      %p123 = scmp.ne.s32.totalorder %s115, %s117
      %p124 = scmp.eq.s32.totalorder %s30, 3
      %p125 = por %p123, %p124
      %p126 = scmp.ne.s32.totalorder %s117, %s118
      %p127 = scmp.eq.s32.totalorder %s30, 0
      %p128 = por %p126, %p127
      %p129 = scmp.ne.s32.totalorder %s117, %s118
      %p130 = scmp.eq.s32.totalorder %s31, 3
      %p131 = por %p129, %p130
      %p133 = scmp.ne.s32.totalorder %s118, %s132
      %p134 = scmp.eq.s32.totalorder %s31, 0
      %p135 = por %p133, %p134
      %s137 = sadd.s32 %s136, 1
      %p140 = scmp.eq.s32.totalorder %s25, 3
      %p141 = scmp.ne.s32.totalorder %s136, %s138
      %p142 = scmp.eq.s32.totalorder %s25, 0
      %p143 = por %p141, %p142
      %p144 = scmp.ne.s32.totalorder %s136, %s138
      %p145 = scmp.eq.s32.totalorder %s30, 3
      %p146 = por %p144, %p145
      %p147 = scmp.ne.s32.totalorder %s138, %s139
      %p148 = scmp.eq.s32.totalorder %s30, 0
      %p149 = por %p147, %p148
      %p150 = scmp.ne.s32.totalorder %s138, %s139
      %p151 = scmp.eq.s32.totalorder %s31, 3
      %p152 = por %p150, %p151
      %p154 = scmp.ne.s32.totalorder %s139, %s153
      %p155 = scmp.eq.s32.totalorder %s31, 0
      %p156 = por %p154, %p155
      %s158 = sadd.s32 %s157, 1
      %p161 = scmp.eq.s32.totalorder %s25, 3
      %p162 = scmp.ne.s32.totalorder %s157, %s159
      %p163 = scmp.eq.s32.totalorder %s25, 0
      %p164 = por %p162, %p163
      %p165 = scmp.ne.s32.totalorder %s157, %s159
      %p166 = scmp.eq.s32.totalorder %s30, 3
      %p167 = por %p165, %p166
      %p168 = scmp.ne.s32.totalorder %s159, %s160
      %p169 = scmp.eq.s32.totalorder %s30, 0
      %p170 = por %p168, %p169
      %p171 = scmp.ne.s32.totalorder %s159, %s160
      %p172 = scmp.eq.s32.totalorder %s31, 3
      %p173 = por %p171, %p172
      %p175 = scmp.ne.s32.totalorder %s160, %s174
      %p176 = scmp.eq.s32.totalorder %s31, 0
      %p177 = por %p175, %p176
      %s179 = sadd.s32 %s178, 1
      %p182 = scmp.eq.s32.totalorder %s25, 3
      %p183 = scmp.ne.s32.totalorder %s178, %s180
      %p184 = scmp.eq.s32.totalorder %s25, 0
      %p185 = por %p183, %p184
      %p186 = scmp.ne.s32.totalorder %s178, %s180
      %p187 = scmp.eq.s32.totalorder %s30, 3
      %p188 = por %p186, %p187
      %p189 = scmp.ne.s32.totalorder %s180, %s181
      %p190 = scmp.eq.s32.totalorder %s30, 0
      %p191 = por %p189, %p190
      %p192 = scmp.ne.s32.totalorder %s180, %s181
      %p193 = scmp.eq.s32.totalorder %s31, 3
      %p194 = por %p192, %p193
      %p196 = scmp.ne.s32.totalorder %s181, %s195
      %p197 = scmp.eq.s32.totalorder %s31, 0
      %p198 = por %p196, %p197
      %s200 = sadd.s32 %s199, 1
      %p203 = scmp.eq.s32.totalorder %s25, 3
      %p204 = scmp.ne.s32.totalorder %s199, %s201
      %p205 = scmp.eq.s32.totalorder %s25, 0
      %p206 = por %p204, %p205
      %p207 = scmp.ne.s32.totalorder %s199, %s201
      %p208 = scmp.eq.s32.totalorder %s30, 3
      %p209 = por %p207, %p208
      %p210 = scmp.ne.s32.totalorder %s201, %s202
      %p211 = scmp.eq.s32.totalorder %s30, 0
      %p212 = por %p210, %p211
      %p213 = scmp.ne.s32.totalorder %s201, %s202
      %p214 = scmp.eq.s32.totalorder %s31, 3
      %p215 = por %p213, %p214
      %p217 = scmp.ne.s32.totalorder %s202, %s216
      %p218 = scmp.eq.s32.totalorder %s31, 0
      %p219 = por %p217, %p218
      %s221 = sadd.s32 %s220, 1
      %p224 = scmp.eq.s32.totalorder %s25, 3
      %p225 = scmp.ne.s32.totalorder %s220, %s222
      %p226 = scmp.eq.s32.totalorder %s25, 0
      %p227 = por %p225, %p226
      %p228 = scmp.ne.s32.totalorder %s220, %s222
      %p229 = scmp.eq.s32.totalorder %s30, 3
      %p230 = por %p228, %p229
      %p231 = scmp.ne.s32.totalorder %s222, %s223
      %p232 = scmp.eq.s32.totalorder %s30, 0
      %p233 = por %p231, %p232
      %p234 = scmp.ne.s32.totalorder %s222, %s223
      %p235 = scmp.eq.s32.totalorder %s31, 3
      %p236 = por %p234, %p235
      %p238 = scmp.ne.s32.totalorder %s223, %s237
      %p239 = scmp.eq.s32.totalorder %s31, 0
      %p240 = por %p238, %p239
      %s242 = sadd.s32 %s241, 1
      %p245 = scmp.eq.s32.totalorder %s25, 3
      %p246 = scmp.ne.s32.totalorder %s241, %s243
      %p247 = scmp.eq.s32.totalorder %s25, 0
      %p248 = por %p246, %p247
      %p249 = scmp.ne.s32.totalorder %s241, %s243
      %p250 = scmp.eq.s32.totalorder %s30, 3
      %p251 = por %p249, %p250
      %p252 = scmp.ne.s32.totalorder %s243, %s244
      %p253 = scmp.eq.s32.totalorder %s30, 0
      %p254 = por %p252, %p253
      %p255 = scmp.ne.s32.totalorder %s243, %s244
      %p256 = scmp.eq.s32.totalorder %s31, 3
      %p257 = por %p255, %p256
      %p259 = scmp.ne.s32.totalorder %s244, %s258
      %p260 = scmp.eq.s32.totalorder %s31, 0
      %p261 = por %p259, %p260
      %s262 = ssub.s32 %s32, %s44
      %s263 = ssub.s32 %s33, %s40
      %s264 = sor.u32 %s262, %s263
      %p265 = scmp.eq.s32.totalorder %s264, 0
      %s267 = sadd.s32 %s266, 1
      %s268 = scalar_select %p265, %s266, %s267
      %p271 = pneg %p265
      %p272 = scmp.eq.s32.totalorder %s25, 3
      %p273 = por %p271, %p272
      %p274 = scmp.ne.s32.totalorder %s266, %s269
      %p275 = scmp.eq.s32.totalorder %s25, 0
      %p276 = por %p274, %p275
      %p277 = scmp.ne.s32.totalorder %s266, %s269
      %p278 = scmp.eq.s32.totalorder %s30, 3
      %p279 = por %p277, %p278
      %p280 = scmp.ne.s32.totalorder %s269, %s270
      %p281 = scmp.eq.s32.totalorder %s30, 0
      %p282 = por %p280, %p281
      %p283 = scmp.ne.s32.totalorder %s269, %s270
      %p284 = scmp.eq.s32.totalorder %s31, 3
      %p285 = por %p283, %p284
      %p287 = scmp.ne.s32.totalorder %s270, %s286
      %p288 = scmp.eq.s32.totalorder %s31, 0
      %p289 = por %p287, %p288
      %p290 = scmp.le.s32.totalorder 1, %s25
      %p291 = scmp.lt.s32.totalorder %s25, 5
      %p292 = pnand %p290, %p291
      %p293 = pneg %p292
      // Predicated region
      $region9: #{tpu_custom_call.1} parent=5 // pred_check
        _
      $region10: #{tpu_custom_call.1} parent=5 // pred_check_branch
        %295 = sbr.rel (%p292) target = $region12
      $region11: #{tpu_custom_call.1} parent=5 // pred_region
        %s296 = ssub.s32 %s25, 1
        // Predicated region
        $region13: #{tpu_custom_call.1} parent=11 // pred_check
          %p297 = pneg %p86
        $region14: #{tpu_custom_call.1} parent=11 // pred_check_branch
          %299 = sbr.rel (%p297) target = $region16
        $region15: #{tpu_custom_call.1} parent=11 // pred_region
          %s301 = ssub.s32 256, 256
          %302 = vsyncadd [#allocation9], %s301
          %s303 = sshll.u32 [#allocation8], 4
          %s304 = int_to_ptr.vmem [resolvable:$true] %s303
          %309 = dma.hbm_to_vmem [thread:$0]  %s1, 256, %s304, [#allocation9], 128, 128, 8
        $region16: #{tpu_custom_call.1} parent=11 // pred_fallthru
          _
        // Predicated region
        $region17: #{tpu_custom_call.1} parent=11 // pred_check
          %p310 = pneg %p107
        $region18: #{tpu_custom_call.1} parent=11 // pred_check_branch
          %312 = sbr.rel (%p310) target = $region20
        $region19: #{tpu_custom_call.1} parent=11 // pred_region
          %s314 = ssub.s32 256, 256
          %315 = vsyncadd [#allocation9], %s314
          %s316 = sshll.u32 [#allocation10], 4
          %s317 = int_to_ptr.vmem [resolvable:$true] %s316
          %322 = dma.hbm_to_vmem [thread:$0]  %s2, 256, %s317, [#allocation9], 128, 128, 8
        $region20: #{tpu_custom_call.1} parent=11 // pred_fallthru
          _
        // Predicated region
        $region21: #{tpu_custom_call.1} parent=11 // pred_check
          %p323 = pneg %p128
        $region22: #{tpu_custom_call.1} parent=11 // pred_check_branch
          %325 = sbr.rel (%p323) target = $region24
        $region23: #{tpu_custom_call.1} parent=11 // pred_region
          %s327 = ssub.s32 256, 256
          %328 = vsyncadd [#allocation12], %s327
          %s329 = sshll.u32 [#allocation11], 4
          %s330 = int_to_ptr.vmem [resolvable:$true] %s329
          %335 = dma.hbm_to_vmem [thread:$0]  %s3, 256, %s330, [#allocation12], 128, 128, 8
        $region24: #{tpu_custom_call.1} parent=11 // pred_fallthru
          _
        // Predicated region
        $region25: #{tpu_custom_call.1} parent=11 // pred_check
          %p336 = pneg %p149
        $region26: #{tpu_custom_call.1} parent=11 // pred_check_branch
          %338 = sbr.rel (%p336) target = $region28
        $region27: #{tpu_custom_call.1} parent=11 // pred_region
          %s340 = ssub.s32 256, 256
          %341 = vsyncadd [#allocation12], %s340
          %s342 = sshll.u32 [#allocation13], 4
          %s343 = int_to_ptr.vmem [resolvable:$true] %s342
          %348 = dma.hbm_to_vmem [thread:$0]  %s4, 256, %s343, [#allocation12], 128, 128, 8
        $region28: #{tpu_custom_call.1} parent=11 // pred_fallthru
          _
        // Predicated region
        $region29: #{tpu_custom_call.1} parent=11 // pred_check
          %p349 = pneg %p170
        $region30: #{tpu_custom_call.1} parent=11 // pred_check_branch
          %351 = sbr.rel (%p349) target = $region32
        $region31: #{tpu_custom_call.1} parent=11 // pred_region
          _
        $region32: #{tpu_custom_call.1} parent=11 // pred_fallthru
          _
        // Predicated region
        $region33: #{tpu_custom_call.1} parent=11 // pred_check
          %p352 = pneg %p191
        $region34: #{tpu_custom_call.1} parent=11 // pred_check_branch
          %354 = sbr.rel (%p352) target = $region36
        $region35: #{tpu_custom_call.1} parent=11 // pred_region
          %s356 = ssub.s32 256, 256
          %357 = vsyncadd [#allocation15], %s356
          %s358 = sshll.u32 [#allocation14], 4
          %s359 = int_to_ptr.vmem [resolvable:$true] %s358
          %364 = dma.hbm_to_vmem [thread:$0]  %s6, 256, %s359, [#allocation15], 128, 128, 8
        $region36: #{tpu_custom_call.1} parent=11 // pred_fallthru
          _
        // Predicated region
        $region37: #{tpu_custom_call.1} parent=11 // pred_check
          %p365 = pneg %p212
        $region38: #{tpu_custom_call.1} parent=11 // pred_check_branch
          %367 = sbr.rel (%p365) target = $region40
        $region39: #{tpu_custom_call.1} parent=11 // pred_region
          _
        $region40: #{tpu_custom_call.1} parent=11 // pred_fallthru
          _
        // Predicated region
        $region41: #{tpu_custom_call.1} parent=11 // pred_check
          %p368 = pneg %p233
        $region42: #{tpu_custom_call.1} parent=11 // pred_check_branch
          %370 = sbr.rel (%p368) target = $region44
        $region43: #{tpu_custom_call.1} parent=11 // pred_region
          %s372 = ssub.s32 2048, 2048
          %373 = vsyncadd [#allocation15], %s372
          %s374 = sshll.u32 [#allocation16], 4
          %s375 = int_to_ptr.vmem [resolvable:$true] %s374
          %380 = dma.hbm_to_vmem [thread:$0]  %s8, 2048, %s375, [#allocation15], 128, 128, 8
        $region44: #{tpu_custom_call.1} parent=11 // pred_fallthru
          _
        // Predicated region
        $region45: #{tpu_custom_call.1} parent=11 // pred_check
          %p381 = pneg %p254
        $region46: #{tpu_custom_call.1} parent=11 // pred_check_branch
          %383 = sbr.rel (%p381) target = $region48
        $region47: #{tpu_custom_call.1} parent=11 // pred_region
          _
        $region48: #{tpu_custom_call.1} parent=11 // pred_fallthru
          _
      $region12: #{tpu_custom_call.1} parent=5 // pred_fallthru
        _
      %p384 = scmp.lt.s32.totalorder %s25, 4
      // Predicated region
      $region49: #{tpu_custom_call.1} parent=5 // pred_check
        %p385 = pneg %p384
      $region50: #{tpu_custom_call.1} parent=5 // pred_check_branch
        %387 = sbr.rel (%p385) target = $region52
      $region51: #{tpu_custom_call.1} parent=5 // pred_region
        // Predicated region
        $region53: #{tpu_custom_call.1} parent=51 // pred_check
          %p388 = pneg %p59
        $region54: #{tpu_custom_call.1} parent=51 // pred_check_branch
          %390 = sbr.rel (%p388) target = $region56
        $region55: #{tpu_custom_call.1} parent=51 // pred_region
          %s391 = sand.u32 %s49, 1
          %s392 = scalar_lea.sflag [#allocation6], %s391
          %s393 = sand.u32 %s49, 1
          %s394 = smul.addr %s393, 256
          %s395 = scalar_lea.vmem [#allocation5], %s394
          %s396 = smul.u32 32, %s33
          %s398 = ssub.s32 4096, 4096
          %399 = vsyncadd %s392, %s398
          %s400 = smul.addr %s32, 64
          %s401 = sadd.s32 %s396, %s400
          %s402 = smul.addr %s401, 128
          %s403 = scalar_lea.hbm %s0, %s402
          %s404 = sshll.u32 %s395, 4
          %s405 = int_to_ptr.vmem [resolvable:$true] %s404
          %410 = dma.hbm_to_vmem [thread:$0]  %s403, 4096, %s405, %s392, 128, 128, 8
        $region56: #{tpu_custom_call.1} parent=51 // pred_fallthru
          _
      $region52: #{tpu_custom_call.1} parent=5 // pred_fallthru
        _
      %p411 = scmp.le.s32.totalorder 1, %s25
      %p412 = scmp.lt.s32.totalorder %s25, 5
      %p413 = pnand %p411, %p412
      %p414 = pneg %p413
      // Predicated region
      $region57: #{tpu_custom_call.1} parent=5 // pred_check
        _
      $region58: #{tpu_custom_call.1} parent=5 // pred_check_branch
        %416 = sbr.rel (%p413) target = $region60
      $region59: #{tpu_custom_call.1} parent=5 // pred_region
        %s417 = ssub.s32 %s25, 1
        %s418 = sand.u32 %s52, 1
        %s419 = scalar_lea.sflag [#allocation6], %s418
        %s420 = sand.u32 %s52, 1
        %s421 = smul.addr %s420, 256
        %s422 = scalar_lea.vmem [#allocation5], %s421
        // Predicated region
        $region61: #{tpu_custom_call.1} parent=59 // pred_check
          %p423 = pneg %p65
        $region62: #{tpu_custom_call.1} parent=59 // pred_check_branch
          %425 = sbr.rel (%p423) target = $region64
        $region63: #{tpu_custom_call.1} parent=59 // pred_region
          %426 = dma.done %s419, 4096
        $region64: #{tpu_custom_call.1} parent=59 // pred_fallthru
          _
        // Predicated region
        $region65: #{tpu_custom_call.1} parent=59 // pred_check
          %p427 = pneg %p86
        $region66: #{tpu_custom_call.1} parent=59 // pred_check_branch
          %429 = sbr.rel (%p427) target = $region68
        $region67: #{tpu_custom_call.1} parent=59 // pred_region
          %430 = dma.done [#allocation9], 256
        $region68: #{tpu_custom_call.1} parent=59 // pred_fallthru
          _
        // Predicated region
        $region69: #{tpu_custom_call.1} parent=59 // pred_check
          %p431 = pneg %p107
        $region70: #{tpu_custom_call.1} parent=59 // pred_check_branch
          %433 = sbr.rel (%p431) target = $region72
        $region71: #{tpu_custom_call.1} parent=59 // pred_region
          %434 = dma.done [#allocation9], 256
        $region72: #{tpu_custom_call.1} parent=59 // pred_fallthru
          _
        // Predicated region
        $region73: #{tpu_custom_call.1} parent=59 // pred_check
          %p435 = pneg %p128
        $region74: #{tpu_custom_call.1} parent=59 // pred_check_branch
          %437 = sbr.rel (%p435) target = $region76
        $region75: #{tpu_custom_call.1} parent=59 // pred_region
          %438 = dma.done [#allocation12], 256
        $region76: #{tpu_custom_call.1} parent=59 // pred_fallthru
          _
        // Predicated region
        $region77: #{tpu_custom_call.1} parent=59 // pred_check
          %p439 = pneg %p149
        $region78: #{tpu_custom_call.1} parent=59 // pred_check_branch
          %441 = sbr.rel (%p439) target = $region80
        $region79: #{tpu_custom_call.1} parent=59 // pred_region
          %442 = dma.done [#allocation12], 256
        $region80: #{tpu_custom_call.1} parent=59 // pred_fallthru
          _
        // Predicated region
        $region81: #{tpu_custom_call.1} parent=59 // pred_check
          %p443 = pneg %p191
        $region82: #{tpu_custom_call.1} parent=59 // pred_check_branch
          %445 = sbr.rel (%p443) target = $region84
        $region83: #{tpu_custom_call.1} parent=59 // pred_region
          %446 = dma.done [#allocation15], 256
        $region84: #{tpu_custom_call.1} parent=59 // pred_fallthru
          _
        // Predicated region
        $region85: #{tpu_custom_call.1} parent=59 // pred_check
          %p447 = pneg %p233
        $region86: #{tpu_custom_call.1} parent=59 // pred_check_branch
          %449 = sbr.rel (%p447) target = $region88
        $region87: #{tpu_custom_call.1} parent=59 // pred_region
          %450 = dma.done [#allocation15], 2048
        $region88: #{tpu_custom_call.1} parent=59 // pred_fallthru
          _
        %s451 = sand.u32 %s52, 1
        %s452 = scalar_lea.sflag [#allocation6], %s451
        %s453 = sand.u32 %s52, 1
        %s454 = smul.addr %s453, 256
        %s455 = scalar_lea.vmem [#allocation5], %s454
        %p456 = pneg %p65
        %p457 = pneg %p62
        %p458 = pneg %p86
        %p459 = pneg %p83
        %p460 = pneg %p107
        %p461 = pneg %p104
        %p462 = pneg %p128
        %p463 = pneg %p125
        %p464 = pneg %p149
        %p465 = pneg %p146
        %p466 = pneg %p170
        %p467 = pneg %p167
        %p468 = pneg %p191
        %p469 = pneg %p188
        %p470 = pneg %p212
        %p471 = pneg %p209
        %p472 = pneg %p233
        %p473 = pneg %p230
        %p474 = pneg %p254
        %p475 = pneg %p251
        %p476 = pneg %p282
        %p477 = pneg %p279
        %s478 = sand.u32 %s269, 1
        %s479 = scalar_lea.sflag [#allocation7], %s478
        %s480 = sand.u32 %s269, 1
        %s481 = smul.addr %s480, 256
        %s482 = scalar_lea.vmem [#allocation17], %s481
        %s483 = smul.u32 32, %s35
        %s484 = smul.u32 32, %s35
        %p486 = scmp.eq.s32.totalorder %s35, 0
        // Predicated region
        $region89: #{tpu_custom_call.1} parent=59 // pred_check
          %p487 = pneg %p486
        $region90: #{tpu_custom_call.1} parent=59 // pred_check_branch
          %489 = sbr.rel (%p487) target = $region92
        $region91: #{tpu_custom_call.1} parent=59 // pred_region
          %490 = vst [vmem:[#allocation2] sm:$0xff] 0.0
          %491 = vst [vmem:[#allocation2 + $0x8] sm:$0xff] 0.0
          %492 = vst [vmem:[#allocation3] sm:$0xff] 0.0
          %493 = vst [vmem:[#allocation3 + $0x8] sm:$0xff] 0.0
        $region92: #{tpu_custom_call.1} parent=59 // pred_fallthru
          _
        %v494 = vld [vmem:[#allocation8] sm:$0xff]
        %v495 = vld [vmem:[#allocation8 + $0x8] sm:$0xff]
        %v496 = vld [vmem:[#allocation10] sm:$0xff]
        %v497 = vld [vmem:[#allocation10 + $0x8] sm:$0xff]
        %v498 = vld [vmem:[#allocation11] sm:$0xff]
        %v499 = vld [vmem:[#allocation11 + $0x8] sm:$0xff]
        %v500 = vld [vmem:[#allocation13] sm:$0xff]
        %v501 = vld [vmem:[#allocation13 + $0x8] sm:$0xff]
        %v502 = vld [vmem:[%s5] sm:$0xff]
        %v503 = vld [vmem:[%s5 + $0x8] sm:$0xff]
        %v504 = vld [vmem:[#allocation14] sm:$0xff]
        %v505 = vld [vmem:[#allocation14 + $0x8] sm:$0xff]
        %v506 = vld [vmem:[#allocation2] sm:$0xff]
        %v507 = vld [vmem:[#allocation2 + $0x8] sm:$0xff]
        %v508 = vld [vmem:[#allocation3] sm:$0xff]
        %v509 = vld [vmem:[#allocation3 + $0x8] sm:$0xff]
        loop: start=0, step=1, limit=32
        $region93: #{tpu_custom_call.1} parent=59 // loop_pre_header
          _
        $region94: #{tpu_custom_call.1} parent=59 // loop_header
          %s511 = sphi 0, %s515
          %p512 = scmp.ge.s32.totalorder %s511, 32
          %v516 = vphi %v506, %v812
          %v517 = vphi %v507, %v813
          %v518 = vphi %v508, %v820
          %v519 = vphi %v509, %v821
        $region95: #{tpu_custom_call.1} parent=59 // loop_header_branch
          %514 = sbr.rel (%p512) target = $region99
        $region96: #{tpu_custom_call.1} parent=59 // loop_body
          %s520 = smul.u32 %s511, 8
          %s521 = scalar_lea.vmem %s422, %s520 [#allocation5]
          %v522 = vld [vmem:[%s521] sm:$0x1]
          %s523 = sadd.s32 %s520, 1
          %s524 = scalar_lea.vmem %s422, %s523 [#allocation5]
          %v525 = vld [vmem:[%s524] sm:$0x1]
          %v526 = vmul.f32 %v494, %v516
          %v527 = vmul.f32 %v495, %v517
          %v528 = vmul.f32 %v496, %v518
          %v529 = vmul.f32 %v497, %v519
          %v530 = vsub.f32 %v526, %v528
          %v531 = vsub.f32 %v527, %v529
          %v532 = vlaneseq
          %v533 = vshrl.u32 %v532, 7
          %v534 = vsub.s32 0, %v533
          %v535 = vrot.slane %v522, %v534
          %v536 = vadd.f32 %v530, %v535
          %v537 = vadd.f32 %v531, %v535
          %v538 = vmul.f32 %v494, %v518
          %v539 = vmul.f32 %v495, %v519
          %v540 = vmul.f32 %v496, %v516
          %v541 = vmul.f32 %v497, %v517
          %v542 = vadd.f32 %v538, %v540
          %v543 = vadd.f32 %v539, %v541
          %v544 = vmul.f32 %v498, %v516
          %v545 = vmul.f32 %v499, %v517
          %v546 = vmul.f32 %v500, %v518
          %v547 = vmul.f32 %v501, %v519
          %v548 = vsub.f32 %v544, %v546
          %v549 = vsub.f32 %v545, %v547
          %v550 = vmul.f32 %v494, %v535
          %v551 = vmul.f32 %v495, %v535
          %v552 = vlaneseq
          %v553 = vshrl.u32 %v552, 7
          %v554 = vsub.s32 0, %v553
          %v555 = vrot.slane %v525, %v554
          %v556 = vadd.f32 %v550, %v555
          %v557 = vadd.f32 %v551, %v555
          %v558 = vadd.f32 %v548, %v556
          %v559 = vadd.f32 %v549, %v557
          %v560 = vmul.f32 %v498, %v518
          %v561 = vmul.f32 %v499, %v519
          %v562 = vmul.f32 %v500, %v516
          %v563 = vmul.f32 %v501, %v517
          %v564 = vadd.f32 %v560, %v562
          %v565 = vadd.f32 %v561, %v563
          %v566 = vmul.f32 %v496, %v535
          %v567 = vmul.f32 %v497, %v535
          %v568 = vadd.f32 %v564, %v566
          %v569 = vadd.f32 %v565, %v567
          %v570 = vmul.f32 %v502, %v536
          %v571 = vmul.f32 %v503, %v537
          %v572 = vmul.f32 %v504, %v542
          %v573 = vmul.f32 %v505, %v543
          %v574 = vsub.f32 %v570, %v572
          %v575 = vsub.f32 %v571, %v573
          %v576 = vadd.f32 %v574, %v575
          %v577 = vrot.slane %v576, 4
          %v578 = vadd.f32 %v576, %v577
          %v579 = vrot.slane %v578, 2
          %v580 = vadd.f32 %v578, %v579
          %v581 = vrot.slane %v580, 1
          %v582 = vadd.f32 %v580, %v581
          %v583 = vmul.f32 %v502, %v558
          %v584 = vmul.f32 %v503, %v559
          %v585 = vmul.f32 %v504, %v568
          %v586 = vmul.f32 %v505, %v569
          %v587 = vsub.f32 %v583, %v585
          %v588 = vsub.f32 %v584, %v586
          %v589 = vadd.f32 %v587, %v588
          %v590 = vrot.slane %v589, 4
          %v591 = vadd.f32 %v589, %v590
          %v592 = vrot.slane %v591, 2
          %v593 = vadd.f32 %v591, %v592
          %v594 = vrot.slane %v593, 1
          %v595 = vadd.f32 %v593, %v594
          %s596 = sadd.s32 %s520, 2
          %s597 = scalar_lea.vmem %s422, %s596 [#allocation5]
          %v598 = vld [vmem:[%s597] sm:$0x1]
          %s599 = sadd.s32 %s520, 3
          %s600 = scalar_lea.vmem %s422, %s599 [#allocation5]
          %v601 = vld [vmem:[%s600] sm:$0x1]
          %v602 = vmul.f32 %v494, %v555
          %v603 = vmul.f32 %v495, %v555
          %v604 = vlaneseq
          %v605 = vshrl.u32 %v604, 7
          %v606 = vsub.s32 0, %v605
          %v607 = vrot.slane %v598, %v606
          %v608 = vadd.f32 %v602, %v607
          %v609 = vadd.f32 %v603, %v607
          %v610 = vmul.f32 %v496, %v555
          %v611 = vmul.f32 %v497, %v555
          %v612 = vmul.f32 %v494, %v607
          %v613 = vmul.f32 %v495, %v607
          %v614 = vlaneseq
          %v615 = vshrl.u32 %v614, 7
          %v616 = vsub.s32 0, %v615
          %v617 = vrot.slane %v601, %v616
          %v618 = vadd.f32 %v612, %v617
          %v619 = vadd.f32 %v613, %v617
          %v620 = vmul.f32 %v496, %v607
          %v621 = vmul.f32 %v497, %v607
          %v622 = vmul.f32 %v498, %v536
          %v623 = vmul.f32 %v499, %v537
          %v624 = vmul.f32 %v500, %v542
          %v625 = vmul.f32 %v501, %v543
          %v626 = vsub.f32 %v622, %v624
          %v627 = vsub.f32 %v623, %v625
          %v628 = vadd.f32 %v626, %v608
          %v629 = vadd.f32 %v627, %v609
          %v630 = vmul.f32 %v498, %v542
          %v631 = vmul.f32 %v499, %v543
          %v632 = vmul.f32 %v500, %v536
          %v633 = vmul.f32 %v501, %v537
          %v634 = vadd.f32 %v630, %v632
          %v635 = vadd.f32 %v631, %v633
          %v636 = vadd.f32 %v634, %v610
          %v637 = vadd.f32 %v635, %v611
          %v638 = vmul.f32 %v498, %v558
          %v639 = vmul.f32 %v499, %v559
          %v640 = vmul.f32 %v500, %v568
          %v641 = vmul.f32 %v501, %v569
          %v642 = vsub.f32 %v638, %v640
          %v643 = vsub.f32 %v639, %v641
          %v644 = vadd.f32 %v642, %v618
          %v645 = vadd.f32 %v643, %v619
          %v646 = vmul.f32 %v498, %v568
          %v647 = vmul.f32 %v499, %v569
          %v648 = vmul.f32 %v500, %v558
          %v649 = vmul.f32 %v501, %v559
          %v650 = vadd.f32 %v646, %v648
          %v651 = vadd.f32 %v647, %v649
          %v652 = vadd.f32 %v650, %v620
          %v653 = vadd.f32 %v651, %v621
          %v654 = vmul.f32 %v502, %v628
          %v655 = vmul.f32 %v503, %v629
          %v656 = vmul.f32 %v504, %v636
          %v657 = vmul.f32 %v505, %v637
          %v658 = vsub.f32 %v654, %v656
          %v659 = vsub.f32 %v655, %v657
          %v660 = vadd.f32 %v658, %v659
          %v661 = vrot.slane %v660, 4
          %v662 = vadd.f32 %v660, %v661
          %v663 = vrot.slane %v662, 2
          %v664 = vadd.f32 %v662, %v663
          %v665 = vrot.slane %v664, 1
          %v666 = vadd.f32 %v664, %v665
          %v667 = vmul.f32 %v502, %v644
          %v668 = vmul.f32 %v503, %v645
          %v669 = vmul.f32 %v504, %v652
          %v670 = vmul.f32 %v505, %v653
          %v671 = vsub.f32 %v667, %v669
          %v672 = vsub.f32 %v668, %v670
          %v673 = vadd.f32 %v671, %v672
          %v674 = vrot.slane %v673, 4
          %v675 = vadd.f32 %v673, %v674
          %v676 = vrot.slane %v675, 2
          %v677 = vadd.f32 %v675, %v676
          %v678 = vrot.slane %v677, 1
          %v679 = vadd.f32 %v677, %v678
          %s680 = sadd.s32 %s520, 4
          %s681 = scalar_lea.vmem %s422, %s680 [#allocation5]
          %v682 = vld [vmem:[%s681] sm:$0x1]
          %s683 = sadd.s32 %s520, 5
          %s684 = scalar_lea.vmem %s422, %s683 [#allocation5]
          %v685 = vld [vmem:[%s684] sm:$0x1]
          %v686 = vmul.f32 %v494, %v617
          %v687 = vmul.f32 %v495, %v617
          %v688 = vlaneseq
          %v689 = vshrl.u32 %v688, 7
          %v690 = vsub.s32 0, %v689
          %v691 = vrot.slane %v682, %v690
          %v692 = vadd.f32 %v686, %v691
          %v693 = vadd.f32 %v687, %v691
          %v694 = vmul.f32 %v496, %v617
          %v695 = vmul.f32 %v497, %v617
          %v696 = vmul.f32 %v494, %v691
          %v697 = vmul.f32 %v495, %v691
          %v698 = vlaneseq
          %v699 = vshrl.u32 %v698, 7
          %v700 = vsub.s32 0, %v699
          %v701 = vrot.slane %v685, %v700
          %v702 = vadd.f32 %v696, %v701
          %v703 = vadd.f32 %v697, %v701
          %v704 = vmul.f32 %v496, %v691
          %v705 = vmul.f32 %v497, %v691
          %v706 = vmul.f32 %v498, %v628
          %v707 = vmul.f32 %v499, %v629
          %v708 = vmul.f32 %v500, %v636
          %v709 = vmul.f32 %v501, %v637
          %v710 = vsub.f32 %v706, %v708
          %v711 = vsub.f32 %v707, %v709
          %v712 = vadd.f32 %v710, %v692
          %v713 = vadd.f32 %v711, %v693
          %v714 = vmul.f32 %v498, %v636
          %v715 = vmul.f32 %v499, %v637
          %v716 = vmul.f32 %v500, %v628
          %v717 = vmul.f32 %v501, %v629
          %v718 = vadd.f32 %v714, %v716
          %v719 = vadd.f32 %v715, %v717
          %v720 = vadd.f32 %v718, %v694
          %v721 = vadd.f32 %v719, %v695
          %v722 = vmul.f32 %v498, %v644
          %v723 = vmul.f32 %v499, %v645
          %v724 = vmul.f32 %v500, %v652
          %v725 = vmul.f32 %v501, %v653
          %v726 = vsub.f32 %v722, %v724
          %v727 = vsub.f32 %v723, %v725
          %v728 = vadd.f32 %v726, %v702
          %v729 = vadd.f32 %v727, %v703
          %v730 = vmul.f32 %v498, %v652
          %v731 = vmul.f32 %v499, %v653
          %v732 = vmul.f32 %v500, %v644
          %v733 = vmul.f32 %v501, %v645
          %v734 = vadd.f32 %v730, %v732
          %v735 = vadd.f32 %v731, %v733
          %v736 = vadd.f32 %v734, %v704
          %v737 = vadd.f32 %v735, %v705
          %v738 = vmul.f32 %v502, %v712
          %v739 = vmul.f32 %v503, %v713
          %v740 = vmul.f32 %v504, %v720
          %v741 = vmul.f32 %v505, %v721
          %v742 = vsub.f32 %v738, %v740
          %v743 = vsub.f32 %v739, %v741
          %v744 = vadd.f32 %v742, %v743
          %v745 = vrot.slane %v744, 4
          %v746 = vadd.f32 %v744, %v745
          %v747 = vrot.slane %v746, 2
          %v748 = vadd.f32 %v746, %v747
          %v749 = vrot.slane %v748, 1
          %v750 = vadd.f32 %v748, %v749
          %v751 = vmul.f32 %v502, %v728
          %v752 = vmul.f32 %v503, %v729
          %v753 = vmul.f32 %v504, %v736
          %v754 = vmul.f32 %v505, %v737
          %v755 = vsub.f32 %v751, %v753
          %v756 = vsub.f32 %v752, %v754
          %v757 = vadd.f32 %v755, %v756
          %v758 = vrot.slane %v757, 4
          %v759 = vadd.f32 %v757, %v758
          %v760 = vrot.slane %v759, 2
          %v761 = vadd.f32 %v759, %v760
          %v762 = vrot.slane %v761, 1
          %v763 = vadd.f32 %v761, %v762
          %s764 = sadd.s32 %s520, 6
          %s765 = scalar_lea.vmem %s422, %s764 [#allocation5]
          %v766 = vld [vmem:[%s765] sm:$0x1]
          %s767 = sadd.s32 %s520, 7
          %s768 = scalar_lea.vmem %s422, %s767 [#allocation5]
          %v769 = vld [vmem:[%s768] sm:$0x1]
          %v770 = vmul.f32 %v494, %v701
          %v771 = vmul.f32 %v495, %v701
          %v772 = vlaneseq
          %v773 = vshrl.u32 %v772, 7
          %v774 = vsub.s32 0, %v773
          %v775 = vrot.slane %v766, %v774
          %v776 = vadd.f32 %v770, %v775
          %v777 = vadd.f32 %v771, %v775
          %v778 = vmul.f32 %v496, %v701
          %v779 = vmul.f32 %v497, %v701
          %v780 = vmul.f32 %v494, %v775
          %v781 = vmul.f32 %v495, %v775
          %v782 = vlaneseq
          %v783 = vshrl.u32 %v782, 7
          %v784 = vsub.s32 0, %v783
          %v785 = vrot.slane %v769, %v784
          %v786 = vadd.f32 %v780, %v785
          %v787 = vadd.f32 %v781, %v785
          %v788 = vmul.f32 %v496, %v775
          %v789 = vmul.f32 %v497, %v775
          %v790 = vmul.f32 %v498, %v712
          %v791 = vmul.f32 %v499, %v713
          %v792 = vmul.f32 %v500, %v720
          %v793 = vmul.f32 %v501, %v721
          %v794 = vsub.f32 %v790, %v792
          %v795 = vsub.f32 %v791, %v793
          %v796 = vadd.f32 %v794, %v776
          %v797 = vadd.f32 %v795, %v777
          %v798 = vmul.f32 %v498, %v720
          %v799 = vmul.f32 %v499, %v721
          %v800 = vmul.f32 %v500, %v712
          %v801 = vmul.f32 %v501, %v713
          %v802 = vadd.f32 %v798, %v800
          %v803 = vadd.f32 %v799, %v801
          %v804 = vadd.f32 %v802, %v778
          %v805 = vadd.f32 %v803, %v779
          %v806 = vmul.f32 %v498, %v728
          %v807 = vmul.f32 %v499, %v729
          %v808 = vmul.f32 %v500, %v736
          %v809 = vmul.f32 %v501, %v737
          %v810 = vsub.f32 %v806, %v808
          %v811 = vsub.f32 %v807, %v809
          %v812 = vadd.f32 %v810, %v786
          %v813 = vadd.f32 %v811, %v787
          %v814 = vmul.f32 %v498, %v736
          %v815 = vmul.f32 %v499, %v737
          %v816 = vmul.f32 %v500, %v728
          %v817 = vmul.f32 %v501, %v729
          %v818 = vadd.f32 %v814, %v816
          %v819 = vadd.f32 %v815, %v817
          %v820 = vadd.f32 %v818, %v788
          %v821 = vadd.f32 %v819, %v789
          %v822 = vmul.f32 %v502, %v796
          %v823 = vmul.f32 %v503, %v797
          %v824 = vmul.f32 %v504, %v804
          %v825 = vmul.f32 %v505, %v805
          %v826 = vsub.f32 %v822, %v824
          %v827 = vsub.f32 %v823, %v825
          %v828 = vadd.f32 %v826, %v827
          %v829 = vrot.slane %v828, 4
          %v830 = vadd.f32 %v828, %v829
          %v831 = vrot.slane %v830, 2
          %v832 = vadd.f32 %v830, %v831
          %v833 = vrot.slane %v832, 1
          %v834 = vadd.f32 %v832, %v833
          %v835 = vmul.f32 %v502, %v812
          %v836 = vmul.f32 %v503, %v813
          %v837 = vmul.f32 %v504, %v820
          %v838 = vmul.f32 %v505, %v821
          %v839 = vsub.f32 %v835, %v837
          %v840 = vsub.f32 %v836, %v838
          %v841 = vadd.f32 %v839, %v840
          %v842 = vrot.slane %v841, 4
          %v843 = vadd.f32 %v841, %v842
          %v844 = vrot.slane %v843, 2
          %v845 = vadd.f32 %v843, %v844
          %v846 = vrot.slane %v845, 1
          %v847 = vadd.f32 %v845, %v846
          %vm848 = vcmask 1040384
          %v849 = vsel %vm848, %v582, %v595
          %vm850 = vcmask 1041408
          %v851 = vsel %vm850, %v849, %v666
          %vm852 = vcmask 1042432
          %v853 = vsel %vm852, %v851, %v679
          %vm854 = vcmask 1043456
          %v855 = vsel %vm854, %v853, %v750
          %vm856 = vcmask 1044480
          %v857 = vsel %vm856, %v855, %v763
          %vm858 = vcmask 1045504
          %v859 = vsel %vm858, %v857, %v834
          %vm860 = vcmask 1046528
          %v861 = vsel %vm860, %v859, %v847
          %s862 = scalar_lea.vmem [#allocation4], %s520
          %863 = vst [vmem:[%s862] sm:$0xff] %v861
        $region97: #{tpu_custom_call.1} parent=59 // loop_footer
          %s515 = sadd.s32 1, %s511
        $region98: #{tpu_custom_call.1} parent=59 // loop_footer_branch
          %510 = sbr.rel target = $region94
        $region99: #{tpu_custom_call.1} parent=59 // loop_exit
          _
        %864 = vst [vmem:[#allocation2] sm:$0xff] %v516
        %865 = vst [vmem:[#allocation2 + $0x8] sm:$0xff] %v517
        %866 = vst [vmem:[#allocation3] sm:$0xff] %v518
        %867 = vst [vmem:[#allocation3 + $0x8] sm:$0xff] %v519
        %v868 = vld [vmem:[%s422] sm:$0xff]
        %v869 = vld [vmem:[%s422 + $0x8] sm:$0xff]
        %v870 = vld [vmem:[%s422 + $0x10] sm:$0xff]
        %v871 = vld [vmem:[%s422 + $0x18] sm:$0xff]
        %v872 = vld [vmem:[%s422 + $0x20] sm:$0xff]
        %v873 = vld [vmem:[%s422 + $0x28] sm:$0xff]
        %v874 = vld [vmem:[%s422 + $0x30] sm:$0xff]
        %v875 = vld [vmem:[%s422 + $0x38] sm:$0xff]
        %v876 = vld [vmem:[%s422 + $0x40] sm:$0xff]
        %v877 = vld [vmem:[%s422 + $0x48] sm:$0xff]
        %v878 = vld [vmem:[%s422 + $0x50] sm:$0xff]
        %v879 = vld [vmem:[%s422 + $0x58] sm:$0xff]
        %v880 = vld [vmem:[%s422 + $0x60] sm:$0xff]
        %v881 = vld [vmem:[%s422 + $0x68] sm:$0xff]
        %v882 = vld [vmem:[%s422 + $0x70] sm:$0xff]
        %v883 = vld [vmem:[%s422 + $0x78] sm:$0xff]
        %v884 = vld [vmem:[%s422 + $0x80] sm:$0xff]
        %v885 = vld [vmem:[%s422 + $0x88] sm:$0xff]
        %v886 = vld [vmem:[%s422 + $0x90] sm:$0xff]
        %v887 = vld [vmem:[%s422 + $0x98] sm:$0xff]
        %v888 = vld [vmem:[%s422 + $0xa0] sm:$0xff]
        %v889 = vld [vmem:[%s422 + $0xa8] sm:$0xff]
        %v890 = vld [vmem:[%s422 + $0xb0] sm:$0xff]
        %v891 = vld [vmem:[%s422 + $0xb8] sm:$0xff]
        %v892 = vld [vmem:[%s422 + $0xc0] sm:$0xff]
        %v893 = vld [vmem:[%s422 + $0xc8] sm:$0xff]
        %v894 = vld [vmem:[%s422 + $0xd0] sm:$0xff]
        %v895 = vld [vmem:[%s422 + $0xd8] sm:$0xff]
        %v896 = vld [vmem:[%s422 + $0xe0] sm:$0xff]
        %v897 = vld [vmem:[%s422 + $0xe8] sm:$0xff]
        %v898 = vld [vmem:[%s422 + $0xf0] sm:$0xff]
        %v899 = vld [vmem:[%s422 + $0xf8] sm:$0xff]
        %v900 = vld [vmem:[#allocation4] sm:$0xff]
        %v901 = vld [vmem:[#allocation4 + $0x8] sm:$0xff]
        %v902 = vld [vmem:[#allocation4 + $0x10] sm:$0xff]
        %v903 = vld [vmem:[#allocation4 + $0x18] sm:$0xff]
        %v904 = vld [vmem:[#allocation4 + $0x20] sm:$0xff]
        %v905 = vld [vmem:[#allocation4 + $0x28] sm:$0xff]
        %v906 = vld [vmem:[#allocation4 + $0x30] sm:$0xff]
        %v907 = vld [vmem:[#allocation4 + $0x38] sm:$0xff]
        %v908 = vld [vmem:[#allocation4 + $0x40] sm:$0xff]
        %v909 = vld [vmem:[#allocation4 + $0x48] sm:$0xff]
        %v910 = vld [vmem:[#allocation4 + $0x50] sm:$0xff]
        %v911 = vld [vmem:[#allocation4 + $0x58] sm:$0xff]
        %v912 = vld [vmem:[#allocation4 + $0x60] sm:$0xff]
        %v913 = vld [vmem:[#allocation4 + $0x68] sm:$0xff]
        %v914 = vld [vmem:[#allocation4 + $0x70] sm:$0xff]
        %v915 = vld [vmem:[#allocation4 + $0x78] sm:$0xff]
        %v916 = vld [vmem:[#allocation4 + $0x80] sm:$0xff]
        %v917 = vld [vmem:[#allocation4 + $0x88] sm:$0xff]
        %v918 = vld [vmem:[#allocation4 + $0x90] sm:$0xff]
        %v919 = vld [vmem:[#allocation4 + $0x98] sm:$0xff]
        %v920 = vld [vmem:[#allocation4 + $0xa0] sm:$0xff]
        %v921 = vld [vmem:[#allocation4 + $0xa8] sm:$0xff]
        %v922 = vld [vmem:[#allocation4 + $0xb0] sm:$0xff]
        %v923 = vld [vmem:[#allocation4 + $0xb8] sm:$0xff]
        %v924 = vld [vmem:[#allocation4 + $0xc0] sm:$0xff]
        %v925 = vld [vmem:[#allocation4 + $0xc8] sm:$0xff]
        %v926 = vld [vmem:[#allocation4 + $0xd0] sm:$0xff]
        %v927 = vld [vmem:[#allocation4 + $0xd8] sm:$0xff]
        %v928 = vld [vmem:[#allocation4 + $0xe0] sm:$0xff]
        %v929 = vld [vmem:[#allocation4 + $0xe8] sm:$0xff]
        %v930 = vld [vmem:[#allocation4 + $0xf0] sm:$0xff]
        %v931 = vld [vmem:[#allocation4 + $0xf8] sm:$0xff]
        %v932 = vld [vmem:[%s7] sm:$0x1]
        %v934 = vlaneseq
        %v935 = vshrl.u32 %v934, 7
        %v936 = vsub.s32 0, %v935
        %v937 = vrot.slane %v932, %v936
        %v939 = vmul.f32 %v868, %v937
        %v940 = vmul.f32 %v869, %v937
        %v941 = vmul.f32 %v870, %v937
        %v942 = vmul.f32 %v871, %v937
        %v943 = vmul.f32 %v872, %v937
        %v944 = vmul.f32 %v873, %v937
        %v945 = vmul.f32 %v874, %v937
        %v946 = vmul.f32 %v875, %v937
        %v947 = vmul.f32 %v876, %v937
        %v948 = vmul.f32 %v877, %v937
        %v949 = vmul.f32 %v878, %v937
        %v950 = vmul.f32 %v879, %v937
        %v951 = vmul.f32 %v880, %v937
        %v952 = vmul.f32 %v881, %v937
        %v953 = vmul.f32 %v882, %v937
        %v954 = vmul.f32 %v883, %v937
        %v955 = vmul.f32 %v884, %v937
        %v956 = vmul.f32 %v885, %v937
        %v957 = vmul.f32 %v886, %v937
        %v958 = vmul.f32 %v887, %v937
        %v959 = vmul.f32 %v888, %v937
        %v960 = vmul.f32 %v889, %v937
        %v961 = vmul.f32 %v890, %v937
        %v962 = vmul.f32 %v891, %v937
        %v963 = vmul.f32 %v892, %v937
        %v964 = vmul.f32 %v893, %v937
        %v965 = vmul.f32 %v894, %v937
        %v966 = vmul.f32 %v895, %v937
        %v967 = vmul.f32 %v896, %v937
        %v968 = vmul.f32 %v897, %v937
        %v969 = vmul.f32 %v898, %v937
        %v970 = vmul.f32 %v899, %v937
        %v971 = vadd.f32 %v900, %v939
        %v972 = vadd.f32 %v901, %v940
        %v973 = vadd.f32 %v902, %v941
        %v974 = vadd.f32 %v903, %v942
        %v975 = vadd.f32 %v904, %v943
        %v976 = vadd.f32 %v905, %v944
        %v977 = vadd.f32 %v906, %v945
        %v978 = vadd.f32 %v907, %v946
        %v979 = vadd.f32 %v908, %v947
        %v980 = vadd.f32 %v909, %v948
        %v981 = vadd.f32 %v910, %v949
        %v982 = vadd.f32 %v911, %v950
        %v983 = vadd.f32 %v912, %v951
        %v984 = vadd.f32 %v913, %v952
        %v985 = vadd.f32 %v914, %v953
        %v986 = vadd.f32 %v915, %v954
        %v987 = vadd.f32 %v916, %v955
        %v988 = vadd.f32 %v917, %v956
        %v989 = vadd.f32 %v918, %v957
        %v990 = vadd.f32 %v919, %v958
        %v991 = vadd.f32 %v920, %v959
        %v992 = vadd.f32 %v921, %v960
        %v993 = vadd.f32 %v922, %v961
        %v994 = vadd.f32 %v923, %v962
        %v995 = vadd.f32 %v924, %v963
        %v996 = vadd.f32 %v925, %v964
        %v997 = vadd.f32 %v926, %v965
        %v998 = vadd.f32 %v927, %v966
        %v999 = vadd.f32 %v928, %v967
        %v1000 = vadd.f32 %v929, %v968
        %v1001 = vadd.f32 %v930, %v969
        %v1002 = vadd.f32 %v931, %v970
        %v1003 = vmul.f32 %v971, 0.5
        %v1004 = vmul.f32 %v972, 0.5
        %v1005 = vmul.f32 %v973, 0.5
        %v1006 = vmul.f32 %v974, 0.5
        %v1007 = vmul.f32 %v975, 0.5
        %v1008 = vmul.f32 %v976, 0.5
        %v1009 = vmul.f32 %v977, 0.5
        %v1010 = vmul.f32 %v978, 0.5
        %v1011 = vmul.f32 %v979, 0.5
        %v1012 = vmul.f32 %v980, 0.5
        %v1013 = vmul.f32 %v981, 0.5
        %v1014 = vmul.f32 %v982, 0.5
        %v1015 = vmul.f32 %v983, 0.5
        %v1016 = vmul.f32 %v984, 0.5
        %v1017 = vmul.f32 %v985, 0.5
        %v1018 = vmul.f32 %v986, 0.5
        %v1019 = vmul.f32 %v987, 0.5
        %v1020 = vmul.f32 %v988, 0.5
        %v1021 = vmul.f32 %v989, 0.5
        %v1022 = vmul.f32 %v990, 0.5
        %v1023 = vmul.f32 %v991, 0.5
        %v1024 = vmul.f32 %v992, 0.5
        %v1025 = vmul.f32 %v993, 0.5
        %v1026 = vmul.f32 %v994, 0.5
        %v1027 = vmul.f32 %v995, 0.5
        %v1028 = vmul.f32 %v996, 0.5
        %v1029 = vmul.f32 %v997, 0.5
        %v1030 = vmul.f32 %v998, 0.5
        %v1031 = vmul.f32 %v999, 0.5
        %v1032 = vmul.f32 %v1000, 0.5
        %v1033 = vmul.f32 %v1001, 0.5
        %v1034 = vmul.f32 %v1002, 0.5
        %v1035 = vmul.f32 %v971, 0.70710677
        %v1036 = vmul.f32 %v972, 0.70710677
        %v1037 = vmul.f32 %v973, 0.70710677
        %v1038 = vmul.f32 %v974, 0.70710677
        %v1039 = vmul.f32 %v975, 0.70710677
        %v1040 = vmul.f32 %v976, 0.70710677
        %v1041 = vmul.f32 %v977, 0.70710677
        %v1042 = vmul.f32 %v978, 0.70710677
        %v1043 = vmul.f32 %v979, 0.70710677
        %v1044 = vmul.f32 %v980, 0.70710677
        %v1045 = vmul.f32 %v981, 0.70710677
        %v1046 = vmul.f32 %v982, 0.70710677
        %v1047 = vmul.f32 %v983, 0.70710677
        %v1048 = vmul.f32 %v984, 0.70710677
        %v1049 = vmul.f32 %v985, 0.70710677
        %v1050 = vmul.f32 %v986, 0.70710677
        %v1051 = vmul.f32 %v987, 0.70710677
        %v1052 = vmul.f32 %v988, 0.70710677
        %v1053 = vmul.f32 %v989, 0.70710677
        %v1054 = vmul.f32 %v990, 0.70710677
        %v1055 = vmul.f32 %v991, 0.70710677
        %v1056 = vmul.f32 %v992, 0.70710677
        %v1057 = vmul.f32 %v993, 0.70710677
        %v1058 = vmul.f32 %v994, 0.70710677
        %v1059 = vmul.f32 %v995, 0.70710677
        %v1060 = vmul.f32 %v996, 0.70710677
        %v1061 = vmul.f32 %v997, 0.70710677
        %v1062 = vmul.f32 %v998, 0.70710677
        %v1063 = vmul.f32 %v999, 0.70710677
        %v1064 = vmul.f32 %v1000, 0.70710677
        %v1065 = vmul.f32 %v1001, 0.70710677
        %v1066 = vmul.f32 %v1002, 0.70710677
        %v1067 = vand.u32 2147483647, %v1035
        %v1068 = vand.u32 2147483647, %v1036
        %v1069 = vand.u32 2147483647, %v1037
        %v1070 = vand.u32 2147483647, %v1038
        %v1071 = vand.u32 2147483647, %v1039
        %v1072 = vand.u32 2147483647, %v1040
        %v1073 = vand.u32 2147483647, %v1041
        %v1074 = vand.u32 2147483647, %v1042
        %v1075 = vand.u32 2147483647, %v1043
        %v1076 = vand.u32 2147483647, %v1044
        %v1077 = vand.u32 2147483647, %v1045
        %v1078 = vand.u32 2147483647, %v1046
        %v1079 = vand.u32 2147483647, %v1047
        %v1080 = vand.u32 2147483647, %v1048
        %v1081 = vand.u32 2147483647, %v1049
        %v1082 = vand.u32 2147483647, %v1050
        %v1083 = vand.u32 2147483647, %v1051
        %v1084 = vand.u32 2147483647, %v1052
        %v1085 = vand.u32 2147483647, %v1053
        %v1086 = vand.u32 2147483647, %v1054
        %v1087 = vand.u32 2147483647, %v1055
        %v1088 = vand.u32 2147483647, %v1056
        %v1089 = vand.u32 2147483647, %v1057
        %v1090 = vand.u32 2147483647, %v1058
        %v1091 = vand.u32 2147483647, %v1059
        %v1092 = vand.u32 2147483647, %v1060
        %v1093 = vand.u32 2147483647, %v1061
        %v1094 = vand.u32 2147483647, %v1062
        %v1095 = vand.u32 2147483647, %v1063
        %v1096 = vand.u32 2147483647, %v1064
        %v1097 = vand.u32 2147483647, %v1065
        %v1098 = vand.u32 2147483647, %v1066
        %v1099 = vmul.f32 %v1067, 0.3275911
        %v1100 = vmul.f32 %v1068, 0.3275911
        %v1101 = vmul.f32 %v1069, 0.3275911
        %v1102 = vmul.f32 %v1070, 0.3275911
        %v1103 = vmul.f32 %v1071, 0.3275911
        %v1104 = vmul.f32 %v1072, 0.3275911
        %v1105 = vmul.f32 %v1073, 0.3275911
        %v1106 = vmul.f32 %v1074, 0.3275911
        %v1107 = vmul.f32 %v1075, 0.3275911
        %v1108 = vmul.f32 %v1076, 0.3275911
        %v1109 = vmul.f32 %v1077, 0.3275911
        %v1110 = vmul.f32 %v1078, 0.3275911
        %v1111 = vmul.f32 %v1079, 0.3275911
        %v1112 = vmul.f32 %v1080, 0.3275911
        %v1113 = vmul.f32 %v1081, 0.3275911
        %v1114 = vmul.f32 %v1082, 0.3275911
        %v1115 = vmul.f32 %v1083, 0.3275911
        %v1116 = vmul.f32 %v1084, 0.3275911
        %v1117 = vmul.f32 %v1085, 0.3275911
        %v1118 = vmul.f32 %v1086, 0.3275911
        %v1119 = vmul.f32 %v1087, 0.3275911
        %v1120 = vmul.f32 %v1088, 0.3275911
        %v1121 = vmul.f32 %v1089, 0.3275911
        %v1122 = vmul.f32 %v1090, 0.3275911
        %v1123 = vmul.f32 %v1091, 0.3275911
        %v1124 = vmul.f32 %v1092, 0.3275911
        %v1125 = vmul.f32 %v1093, 0.3275911
        %v1126 = vmul.f32 %v1094, 0.3275911
        %v1127 = vmul.f32 %v1095, 0.3275911
        %v1128 = vmul.f32 %v1096, 0.3275911
        %v1129 = vmul.f32 %v1097, 0.3275911
        %v1130 = vmul.f32 %v1098, 0.3275911
        %v1131 = vadd.f32 %v1099, 1.0
        %v1132 = vadd.f32 %v1100, 1.0
        %v1133 = vadd.f32 %v1101, 1.0
        %v1134 = vadd.f32 %v1102, 1.0
        %v1135 = vadd.f32 %v1103, 1.0
        %v1136 = vadd.f32 %v1104, 1.0
        %v1137 = vadd.f32 %v1105, 1.0
        %v1138 = vadd.f32 %v1106, 1.0
        %v1139 = vadd.f32 %v1107, 1.0
        %v1140 = vadd.f32 %v1108, 1.0
        %v1141 = vadd.f32 %v1109, 1.0
        %v1142 = vadd.f32 %v1110, 1.0
        %v1143 = vadd.f32 %v1111, 1.0
        %v1144 = vadd.f32 %v1112, 1.0
        %v1145 = vadd.f32 %v1113, 1.0
        %v1146 = vadd.f32 %v1114, 1.0
        %v1147 = vadd.f32 %v1115, 1.0
        %v1148 = vadd.f32 %v1116, 1.0
        %v1149 = vadd.f32 %v1117, 1.0
        %v1150 = vadd.f32 %v1118, 1.0
        %v1151 = vadd.f32 %v1119, 1.0
        %v1152 = vadd.f32 %v1120, 1.0
        %v1153 = vadd.f32 %v1121, 1.0
        %v1154 = vadd.f32 %v1122, 1.0
        %v1155 = vadd.f32 %v1123, 1.0
        %v1156 = vadd.f32 %v1124, 1.0
        %v1157 = vadd.f32 %v1125, 1.0
        %v1158 = vadd.f32 %v1126, 1.0
        %v1159 = vadd.f32 %v1127, 1.0
        %v1160 = vadd.f32 %v1128, 1.0
        %v1161 = vadd.f32 %v1129, 1.0
        %v1162 = vadd.f32 %v1130, 1.0
        %v1163 = vrcp.pop %v1131
        %v1164 = vmul.f32 1.0, %v1163
        %v1165 = vrcp.pop %v1132
        %v1166 = vmul.f32 1.0, %v1165
        %v1167 = vrcp.pop %v1133
        %v1168 = vmul.f32 1.0, %v1167
        %v1169 = vrcp.pop %v1134
        %v1170 = vmul.f32 1.0, %v1169
        %v1171 = vrcp.pop %v1135
        %v1172 = vmul.f32 1.0, %v1171
        %v1173 = vrcp.pop %v1136
        %v1174 = vmul.f32 1.0, %v1173
        %v1175 = vrcp.pop %v1137
        %v1176 = vmul.f32 1.0, %v1175
        %v1177 = vrcp.pop %v1138
        %v1178 = vmul.f32 1.0, %v1177
        %v1179 = vrcp.pop %v1139
        %v1180 = vmul.f32 1.0, %v1179
        %v1181 = vrcp.pop %v1140
        %v1182 = vmul.f32 1.0, %v1181
        %v1183 = vrcp.pop %v1141
        %v1184 = vmul.f32 1.0, %v1183
        %v1185 = vrcp.pop %v1142
        %v1186 = vmul.f32 1.0, %v1185
        %v1187 = vrcp.pop %v1143
        %v1188 = vmul.f32 1.0, %v1187
        %v1189 = vrcp.pop %v1144
        %v1190 = vmul.f32 1.0, %v1189
        %v1191 = vrcp.pop %v1145
        %v1192 = vmul.f32 1.0, %v1191
        %v1193 = vrcp.pop %v1146
        %v1194 = vmul.f32 1.0, %v1193
        %v1195 = vrcp.pop %v1147
        %v1196 = vmul.f32 1.0, %v1195
        %v1197 = vrcp.pop %v1148
        %v1198 = vmul.f32 1.0, %v1197
        %v1199 = vrcp.pop %v1149
        %v1200 = vmul.f32 1.0, %v1199
        %v1201 = vrcp.pop %v1150
        %v1202 = vmul.f32 1.0, %v1201
        %v1203 = vrcp.pop %v1151
        %v1204 = vmul.f32 1.0, %v1203
        %v1205 = vrcp.pop %v1152
        %v1206 = vmul.f32 1.0, %v1205
        %v1207 = vrcp.pop %v1153
        %v1208 = vmul.f32 1.0, %v1207
        %v1209 = vrcp.pop %v1154
        %v1210 = vmul.f32 1.0, %v1209
        %v1211 = vrcp.pop %v1155
        %v1212 = vmul.f32 1.0, %v1211
        %v1213 = vrcp.pop %v1156
        %v1214 = vmul.f32 1.0, %v1213
        %v1215 = vrcp.pop %v1157
        %v1216 = vmul.f32 1.0, %v1215
        %v1217 = vrcp.pop %v1158
        %v1218 = vmul.f32 1.0, %v1217
        %v1219 = vrcp.pop %v1159
        %v1220 = vmul.f32 1.0, %v1219
        %v1221 = vrcp.pop %v1160
        %v1222 = vmul.f32 1.0, %v1221
        %v1223 = vrcp.pop %v1161
        %v1224 = vmul.f32 1.0, %v1223
        %v1225 = vrcp.pop %v1162
        %v1226 = vmul.f32 1.0, %v1225
        %v1227 = vmul.f32 %v1164, 1.0614054
        %v1228 = vmul.f32 %v1166, 1.0614054
        %v1229 = vmul.f32 %v1168, 1.0614054
        %v1230 = vmul.f32 %v1170, 1.0614054
        %v1231 = vmul.f32 %v1172, 1.0614054
        %v1232 = vmul.f32 %v1174, 1.0614054
        %v1233 = vmul.f32 %v1176, 1.0614054
        %v1234 = vmul.f32 %v1178, 1.0614054
        %v1235 = vmul.f32 %v1180, 1.0614054
        %v1236 = vmul.f32 %v1182, 1.0614054
        %v1237 = vmul.f32 %v1184, 1.0614054
        %v1238 = vmul.f32 %v1186, 1.0614054
        %v1239 = vmul.f32 %v1188, 1.0614054
        %v1240 = vmul.f32 %v1190, 1.0614054
        %v1241 = vmul.f32 %v1192, 1.0614054
        %v1242 = vmul.f32 %v1194, 1.0614054
        %v1243 = vmul.f32 %v1196, 1.0614054
        %v1244 = vmul.f32 %v1198, 1.0614054
        %v1245 = vmul.f32 %v1200, 1.0614054
        %v1246 = vmul.f32 %v1202, 1.0614054
        %v1247 = vmul.f32 %v1204, 1.0614054
        %v1248 = vmul.f32 %v1206, 1.0614054
        %v1249 = vmul.f32 %v1208, 1.0614054
        %v1250 = vmul.f32 %v1210, 1.0614054
        %v1251 = vmul.f32 %v1212, 1.0614054
        %v1252 = vmul.f32 %v1214, 1.0614054
        %v1253 = vmul.f32 %v1216, 1.0614054
        %v1254 = vmul.f32 %v1218, 1.0614054
        %v1255 = vmul.f32 %v1220, 1.0614054
        %v1256 = vmul.f32 %v1222, 1.0614054
        %v1257 = vmul.f32 %v1224, 1.0614054
        %v1258 = vmul.f32 %v1226, 1.0614054
        %v1259 = vadd.f32 %v1227, -1.4531521
        %v1260 = vadd.f32 %v1228, -1.4531521
        %v1261 = vadd.f32 %v1229, -1.4531521
        %v1262 = vadd.f32 %v1230, -1.4531521
        %v1263 = vadd.f32 %v1231, -1.4531521
        %v1264 = vadd.f32 %v1232, -1.4531521
        %v1265 = vadd.f32 %v1233, -1.4531521
        %v1266 = vadd.f32 %v1234, -1.4531521
        %v1267 = vadd.f32 %v1235, -1.4531521
        %v1268 = vadd.f32 %v1236, -1.4531521
        %v1269 = vadd.f32 %v1237, -1.4531521
        %v1270 = vadd.f32 %v1238, -1.4531521
        %v1271 = vadd.f32 %v1239, -1.4531521
        %v1272 = vadd.f32 %v1240, -1.4531521
        %v1273 = vadd.f32 %v1241, -1.4531521
        %v1274 = vadd.f32 %v1242, -1.4531521
        %v1275 = vadd.f32 %v1243, -1.4531521
        %v1276 = vadd.f32 %v1244, -1.4531521
        %v1277 = vadd.f32 %v1245, -1.4531521
        %v1278 = vadd.f32 %v1246, -1.4531521
        %v1279 = vadd.f32 %v1247, -1.4531521
        %v1280 = vadd.f32 %v1248, -1.4531521
        %v1281 = vadd.f32 %v1249, -1.4531521
        %v1282 = vadd.f32 %v1250, -1.4531521
        %v1283 = vadd.f32 %v1251, -1.4531521
        %v1284 = vadd.f32 %v1252, -1.4531521
        %v1285 = vadd.f32 %v1253, -1.4531521
        %v1286 = vadd.f32 %v1254, -1.4531521
        %v1287 = vadd.f32 %v1255, -1.4531521
        %v1288 = vadd.f32 %v1256, -1.4531521
        %v1289 = vadd.f32 %v1257, -1.4531521
        %v1290 = vadd.f32 %v1258, -1.4531521
        %v1291 = vmul.f32 %v1164, %v1259
        %v1292 = vmul.f32 %v1166, %v1260
        %v1293 = vmul.f32 %v1168, %v1261
        %v1294 = vmul.f32 %v1170, %v1262
        %v1295 = vmul.f32 %v1172, %v1263
        %v1296 = vmul.f32 %v1174, %v1264
        %v1297 = vmul.f32 %v1176, %v1265
        %v1298 = vmul.f32 %v1178, %v1266
        %v1299 = vmul.f32 %v1180, %v1267
        %v1300 = vmul.f32 %v1182, %v1268
        %v1301 = vmul.f32 %v1184, %v1269
        %v1302 = vmul.f32 %v1186, %v1270
        %v1303 = vmul.f32 %v1188, %v1271
        %v1304 = vmul.f32 %v1190, %v1272
        %v1305 = vmul.f32 %v1192, %v1273
        %v1306 = vmul.f32 %v1194, %v1274
        %v1307 = vmul.f32 %v1196, %v1275
        %v1308 = vmul.f32 %v1198, %v1276
        %v1309 = vmul.f32 %v1200, %v1277
        %v1310 = vmul.f32 %v1202, %v1278
        %v1311 = vmul.f32 %v1204, %v1279
        %v1312 = vmul.f32 %v1206, %v1280
        %v1313 = vmul.f32 %v1208, %v1281
        %v1314 = vmul.f32 %v1210, %v1282
        %v1315 = vmul.f32 %v1212, %v1283
        %v1316 = vmul.f32 %v1214, %v1284
        %v1317 = vmul.f32 %v1216, %v1285
        %v1318 = vmul.f32 %v1218, %v1286
        %v1319 = vmul.f32 %v1220, %v1287
        %v1320 = vmul.f32 %v1222, %v1288
        %v1321 = vmul.f32 %v1224, %v1289
        %v1322 = vmul.f32 %v1226, %v1290
        %v1323 = vadd.f32 %v1291, 1.4214138
        %v1324 = vadd.f32 %v1292, 1.4214138
        %v1325 = vadd.f32 %v1293, 1.4214138
        %v1326 = vadd.f32 %v1294, 1.4214138
        %v1327 = vadd.f32 %v1295, 1.4214138
        %v1328 = vadd.f32 %v1296, 1.4214138
        %v1329 = vadd.f32 %v1297, 1.4214138
        %v1330 = vadd.f32 %v1298, 1.4214138
        %v1331 = vadd.f32 %v1299, 1.4214138
        %v1332 = vadd.f32 %v1300, 1.4214138
        %v1333 = vadd.f32 %v1301, 1.4214138
        %v1334 = vadd.f32 %v1302, 1.4214138
        %v1335 = vadd.f32 %v1303, 1.4214138
        %v1336 = vadd.f32 %v1304, 1.4214138
        %v1337 = vadd.f32 %v1305, 1.4214138
        %v1338 = vadd.f32 %v1306, 1.4214138
        %v1339 = vadd.f32 %v1307, 1.4214138
        %v1340 = vadd.f32 %v1308, 1.4214138
        %v1341 = vadd.f32 %v1309, 1.4214138
        %v1342 = vadd.f32 %v1310, 1.4214138
        %v1343 = vadd.f32 %v1311, 1.4214138
        %v1344 = vadd.f32 %v1312, 1.4214138
        %v1345 = vadd.f32 %v1313, 1.4214138
        %v1346 = vadd.f32 %v1314, 1.4214138
        %v1347 = vadd.f32 %v1315, 1.4214138
        %v1348 = vadd.f32 %v1316, 1.4214138
        %v1349 = vadd.f32 %v1317, 1.4214138
        %v1350 = vadd.f32 %v1318, 1.4214138
        %v1351 = vadd.f32 %v1319, 1.4214138
        %v1352 = vadd.f32 %v1320, 1.4214138
        %v1353 = vadd.f32 %v1321, 1.4214138
        %v1354 = vadd.f32 %v1322, 1.4214138
        %v1355 = vmul.f32 %v1164, %v1323
        %v1356 = vmul.f32 %v1166, %v1324
        %v1357 = vmul.f32 %v1168, %v1325
        %v1358 = vmul.f32 %v1170, %v1326
        %v1359 = vmul.f32 %v1172, %v1327
        %v1360 = vmul.f32 %v1174, %v1328
        %v1361 = vmul.f32 %v1176, %v1329
        %v1362 = vmul.f32 %v1178, %v1330
        %v1363 = vmul.f32 %v1180, %v1331
        %v1364 = vmul.f32 %v1182, %v1332
        %v1365 = vmul.f32 %v1184, %v1333
        %v1366 = vmul.f32 %v1186, %v1334
        %v1367 = vmul.f32 %v1188, %v1335
        %v1368 = vmul.f32 %v1190, %v1336
        %v1369 = vmul.f32 %v1192, %v1337
        %v1370 = vmul.f32 %v1194, %v1338
        %v1371 = vmul.f32 %v1196, %v1339
        %v1372 = vmul.f32 %v1198, %v1340
        %v1373 = vmul.f32 %v1200, %v1341
        %v1374 = vmul.f32 %v1202, %v1342
        %v1375 = vmul.f32 %v1204, %v1343
        %v1376 = vmul.f32 %v1206, %v1344
        %v1377 = vmul.f32 %v1208, %v1345
        %v1378 = vmul.f32 %v1210, %v1346
        %v1379 = vmul.f32 %v1212, %v1347
        %v1380 = vmul.f32 %v1214, %v1348
        %v1381 = vmul.f32 %v1216, %v1349
        %v1382 = vmul.f32 %v1218, %v1350
        %v1383 = vmul.f32 %v1220, %v1351
        %v1384 = vmul.f32 %v1222, %v1352
        %v1385 = vmul.f32 %v1224, %v1353
        %v1386 = vmul.f32 %v1226, %v1354
        %v1387 = vadd.f32 %v1355, -0.28449672
        %v1388 = vadd.f32 %v1356, -0.28449672
        %v1389 = vadd.f32 %v1357, -0.28449672
        %v1390 = vadd.f32 %v1358, -0.28449672
        %v1391 = vadd.f32 %v1359, -0.28449672
        %v1392 = vadd.f32 %v1360, -0.28449672
        %v1393 = vadd.f32 %v1361, -0.28449672
        %v1394 = vadd.f32 %v1362, -0.28449672
        %v1395 = vadd.f32 %v1363, -0.28449672
        %v1396 = vadd.f32 %v1364, -0.28449672
        %v1397 = vadd.f32 %v1365, -0.28449672
        %v1398 = vadd.f32 %v1366, -0.28449672
        %v1399 = vadd.f32 %v1367, -0.28449672
        %v1400 = vadd.f32 %v1368, -0.28449672
        %v1401 = vadd.f32 %v1369, -0.28449672
        %v1402 = vadd.f32 %v1370, -0.28449672
        %v1403 = vadd.f32 %v1371, -0.28449672
        %v1404 = vadd.f32 %v1372, -0.28449672
        %v1405 = vadd.f32 %v1373, -0.28449672
        %v1406 = vadd.f32 %v1374, -0.28449672
        %v1407 = vadd.f32 %v1375, -0.28449672
        %v1408 = vadd.f32 %v1376, -0.28449672
        %v1409 = vadd.f32 %v1377, -0.28449672
        %v1410 = vadd.f32 %v1378, -0.28449672
        %v1411 = vadd.f32 %v1379, -0.28449672
        %v1412 = vadd.f32 %v1380, -0.28449672
        %v1413 = vadd.f32 %v1381, -0.28449672
        %v1414 = vadd.f32 %v1382, -0.28449672
        %v1415 = vadd.f32 %v1383, -0.28449672
        %v1416 = vadd.f32 %v1384, -0.28449672
        %v1417 = vadd.f32 %v1385, -0.28449672
        %v1418 = vadd.f32 %v1386, -0.28449672
        %v1419 = vmul.f32 %v1164, %v1387
        %v1420 = vmul.f32 %v1166, %v1388
        %v1421 = vmul.f32 %v1168, %v1389
        %v1422 = vmul.f32 %v1170, %v1390
        %v1423 = vmul.f32 %v1172, %v1391
        %v1424 = vmul.f32 %v1174, %v1392
        %v1425 = vmul.f32 %v1176, %v1393
        %v1426 = vmul.f32 %v1178, %v1394
        %v1427 = vmul.f32 %v1180, %v1395
        %v1428 = vmul.f32 %v1182, %v1396
        %v1429 = vmul.f32 %v1184, %v1397
        %v1430 = vmul.f32 %v1186, %v1398
        %v1431 = vmul.f32 %v1188, %v1399
        %v1432 = vmul.f32 %v1190, %v1400
        %v1433 = vmul.f32 %v1192, %v1401
        %v1434 = vmul.f32 %v1194, %v1402
        %v1435 = vmul.f32 %v1196, %v1403
        %v1436 = vmul.f32 %v1198, %v1404
        %v1437 = vmul.f32 %v1200, %v1405
        %v1438 = vmul.f32 %v1202, %v1406
        %v1439 = vmul.f32 %v1204, %v1407
        %v1440 = vmul.f32 %v1206, %v1408
        %v1441 = vmul.f32 %v1208, %v1409
        %v1442 = vmul.f32 %v1210, %v1410
        %v1443 = vmul.f32 %v1212, %v1411
        %v1444 = vmul.f32 %v1214, %v1412
        %v1445 = vmul.f32 %v1216, %v1413
        %v1446 = vmul.f32 %v1218, %v1414
        %v1447 = vmul.f32 %v1220, %v1415
        %v1448 = vmul.f32 %v1222, %v1416
        %v1449 = vmul.f32 %v1224, %v1417
        %v1450 = vmul.f32 %v1226, %v1418
        %v1451 = vadd.f32 %v1419, 0.2548296
        %v1452 = vadd.f32 %v1420, 0.2548296
        %v1453 = vadd.f32 %v1421, 0.2548296
        %v1454 = vadd.f32 %v1422, 0.2548296
        %v1455 = vadd.f32 %v1423, 0.2548296
        %v1456 = vadd.f32 %v1424, 0.2548296
        %v1457 = vadd.f32 %v1425, 0.2548296
        %v1458 = vadd.f32 %v1426, 0.2548296
        %v1459 = vadd.f32 %v1427, 0.2548296
        %v1460 = vadd.f32 %v1428, 0.2548296
        %v1461 = vadd.f32 %v1429, 0.2548296
        %v1462 = vadd.f32 %v1430, 0.2548296
        %v1463 = vadd.f32 %v1431, 0.2548296
        %v1464 = vadd.f32 %v1432, 0.2548296
        %v1465 = vadd.f32 %v1433, 0.2548296
        %v1466 = vadd.f32 %v1434, 0.2548296
        %v1467 = vadd.f32 %v1435, 0.2548296
        %v1468 = vadd.f32 %v1436, 0.2548296
        %v1469 = vadd.f32 %v1437, 0.2548296
        %v1470 = vadd.f32 %v1438, 0.2548296
        %v1471 = vadd.f32 %v1439, 0.2548296
        %v1472 = vadd.f32 %v1440, 0.2548296
        %v1473 = vadd.f32 %v1441, 0.2548296
        %v1474 = vadd.f32 %v1442, 0.2548296
        %v1475 = vadd.f32 %v1443, 0.2548296
        %v1476 = vadd.f32 %v1444, 0.2548296
        %v1477 = vadd.f32 %v1445, 0.2548296
        %v1478 = vadd.f32 %v1446, 0.2548296
        %v1479 = vadd.f32 %v1447, 0.2548296
        %v1480 = vadd.f32 %v1448, 0.2548296
        %v1481 = vadd.f32 %v1449, 0.2548296
        %v1482 = vadd.f32 %v1450, 0.2548296
        %v1483 = vmul.f32 %v1164, %v1451
        %v1484 = vmul.f32 %v1166, %v1452
        %v1485 = vmul.f32 %v1168, %v1453
        %v1486 = vmul.f32 %v1170, %v1454
        %v1487 = vmul.f32 %v1172, %v1455
        %v1488 = vmul.f32 %v1174, %v1456
        %v1489 = vmul.f32 %v1176, %v1457
        %v1490 = vmul.f32 %v1178, %v1458
        %v1491 = vmul.f32 %v1180, %v1459
        %v1492 = vmul.f32 %v1182, %v1460
        %v1493 = vmul.f32 %v1184, %v1461
        %v1494 = vmul.f32 %v1186, %v1462
        %v1495 = vmul.f32 %v1188, %v1463
        %v1496 = vmul.f32 %v1190, %v1464
        %v1497 = vmul.f32 %v1192, %v1465
        %v1498 = vmul.f32 %v1194, %v1466
        %v1499 = vmul.f32 %v1196, %v1467
        %v1500 = vmul.f32 %v1198, %v1468
        %v1501 = vmul.f32 %v1200, %v1469
        %v1502 = vmul.f32 %v1202, %v1470
        %v1503 = vmul.f32 %v1204, %v1471
        %v1504 = vmul.f32 %v1206, %v1472
        %v1505 = vmul.f32 %v1208, %v1473
        %v1506 = vmul.f32 %v1210, %v1474
        %v1507 = vmul.f32 %v1212, %v1475
        %v1508 = vmul.f32 %v1214, %v1476
        %v1509 = vmul.f32 %v1216, %v1477
        %v1510 = vmul.f32 %v1218, %v1478
        %v1511 = vmul.f32 %v1220, %v1479
        %v1512 = vmul.f32 %v1222, %v1480
        %v1513 = vmul.f32 %v1224, %v1481
        %v1514 = vmul.f32 %v1226, %v1482
        %v1515 = vsub.f32 0.0, %v1067
        %v1516 = vsub.f32 0.0, %v1068
        %v1517 = vsub.f32 0.0, %v1069
        %v1518 = vsub.f32 0.0, %v1070
        %v1519 = vsub.f32 0.0, %v1071
        %v1520 = vsub.f32 0.0, %v1072
        %v1521 = vsub.f32 0.0, %v1073
        %v1522 = vsub.f32 0.0, %v1074
        %v1523 = vsub.f32 0.0, %v1075
        %v1524 = vsub.f32 0.0, %v1076
        %v1525 = vsub.f32 0.0, %v1077
        %v1526 = vsub.f32 0.0, %v1078
        %v1527 = vsub.f32 0.0, %v1079
        %v1528 = vsub.f32 0.0, %v1080
        %v1529 = vsub.f32 0.0, %v1081
        %v1530 = vsub.f32 0.0, %v1082
        %v1531 = vsub.f32 0.0, %v1083
        %v1532 = vsub.f32 0.0, %v1084
        %v1533 = vsub.f32 0.0, %v1085
        %v1534 = vsub.f32 0.0, %v1086
        %v1535 = vsub.f32 0.0, %v1087
        %v1536 = vsub.f32 0.0, %v1088
        %v1537 = vsub.f32 0.0, %v1089
        %v1538 = vsub.f32 0.0, %v1090
        %v1539 = vsub.f32 0.0, %v1091
        %v1540 = vsub.f32 0.0, %v1092
        %v1541 = vsub.f32 0.0, %v1093
        %v1542 = vsub.f32 0.0, %v1094
        %v1543 = vsub.f32 0.0, %v1095
        %v1544 = vsub.f32 0.0, %v1096
        %v1545 = vsub.f32 0.0, %v1097
        %v1546 = vsub.f32 0.0, %v1098
        %v1547 = vmul.f32 %v1515, %v1067
        %v1548 = vmul.f32 %v1516, %v1068
        %v1549 = vmul.f32 %v1517, %v1069
        %v1550 = vmul.f32 %v1518, %v1070
        %v1551 = vmul.f32 %v1519, %v1071
        %v1552 = vmul.f32 %v1520, %v1072
        %v1553 = vmul.f32 %v1521, %v1073
        %v1554 = vmul.f32 %v1522, %v1074
        %v1555 = vmul.f32 %v1523, %v1075
        %v1556 = vmul.f32 %v1524, %v1076
        %v1557 = vmul.f32 %v1525, %v1077
        %v1558 = vmul.f32 %v1526, %v1078
        %v1559 = vmul.f32 %v1527, %v1079
        %v1560 = vmul.f32 %v1528, %v1080
        %v1561 = vmul.f32 %v1529, %v1081
        %v1562 = vmul.f32 %v1530, %v1082
        %v1563 = vmul.f32 %v1531, %v1083
        %v1564 = vmul.f32 %v1532, %v1084
        %v1565 = vmul.f32 %v1533, %v1085
        %v1566 = vmul.f32 %v1534, %v1086
        %v1567 = vmul.f32 %v1535, %v1087
        %v1568 = vmul.f32 %v1536, %v1088
        %v1569 = vmul.f32 %v1537, %v1089
        %v1570 = vmul.f32 %v1538, %v1090
        %v1571 = vmul.f32 %v1539, %v1091
        %v1572 = vmul.f32 %v1540, %v1092
        %v1573 = vmul.f32 %v1541, %v1093
        %v1574 = vmul.f32 %v1542, %v1094
        %v1575 = vmul.f32 %v1543, %v1095
        %v1576 = vmul.f32 %v1544, %v1096
        %v1577 = vmul.f32 %v1545, %v1097
        %v1578 = vmul.f32 %v1546, %v1098
        %v1579 = vmul.f32 %v1547, 1.442695
        %v1580 = vpow.pop %v1579
        %v1581 = vmul.f32 %v1548, 1.442695
        %v1582 = vpow.pop %v1581
        %v1583 = vmul.f32 %v1549, 1.442695
        %v1584 = vpow.pop %v1583
        %v1585 = vmul.f32 %v1550, 1.442695
        %v1586 = vpow.pop %v1585
        %v1587 = vmul.f32 %v1551, 1.442695
        %v1588 = vpow.pop %v1587
        %v1589 = vmul.f32 %v1552, 1.442695
        %v1590 = vpow.pop %v1589
        %v1591 = vmul.f32 %v1553, 1.442695
        %v1592 = vpow.pop %v1591
        %v1593 = vmul.f32 %v1554, 1.442695
        %v1594 = vpow.pop %v1593
        %v1595 = vmul.f32 %v1555, 1.442695
        %v1596 = vpow.pop %v1595
        %v1597 = vmul.f32 %v1556, 1.442695
        %v1598 = vpow.pop %v1597
        %v1599 = vmul.f32 %v1557, 1.442695
        %v1600 = vpow.pop %v1599
        %v1601 = vmul.f32 %v1558, 1.442695
        %v1602 = vpow.pop %v1601
        %v1603 = vmul.f32 %v1559, 1.442695
        %v1604 = vpow.pop %v1603
        %v1605 = vmul.f32 %v1560, 1.442695
        %v1606 = vpow.pop %v1605
        %v1607 = vmul.f32 %v1561, 1.442695
        %v1608 = vpow.pop %v1607
        %v1609 = vmul.f32 %v1562, 1.442695
        %v1610 = vpow.pop %v1609
        %v1611 = vmul.f32 %v1563, 1.442695
        %v1612 = vpow.pop %v1611
        %v1613 = vmul.f32 %v1564, 1.442695
        %v1614 = vpow.pop %v1613
        %v1615 = vmul.f32 %v1565, 1.442695
        %v1616 = vpow.pop %v1615
        %v1617 = vmul.f32 %v1566, 1.442695
        %v1618 = vpow.pop %v1617
        %v1619 = vmul.f32 %v1567, 1.442695
        %v1620 = vpow.pop %v1619
        %v1621 = vmul.f32 %v1568, 1.442695
        %v1622 = vpow.pop %v1621
        %v1623 = vmul.f32 %v1569, 1.442695
        %v1624 = vpow.pop %v1623
        %v1625 = vmul.f32 %v1570, 1.442695
        %v1626 = vpow.pop %v1625
        %v1627 = vmul.f32 %v1571, 1.442695
        %v1628 = vpow.pop %v1627
        %v1629 = vmul.f32 %v1572, 1.442695
        %v1630 = vpow.pop %v1629
        %v1631 = vmul.f32 %v1573, 1.442695
        %v1632 = vpow.pop %v1631
        %v1633 = vmul.f32 %v1574, 1.442695
        %v1634 = vpow.pop %v1633
        %v1635 = vmul.f32 %v1575, 1.442695
        %v1636 = vpow.pop %v1635
        %v1637 = vmul.f32 %v1576, 1.442695
        %v1638 = vpow.pop %v1637
        %v1639 = vmul.f32 %v1577, 1.442695
        %v1640 = vpow.pop %v1639
        %v1641 = vmul.f32 %v1578, 1.442695
        %v1642 = vpow.pop %v1641
        %v1643 = vmul.f32 %v1483, %v1580
        %v1644 = vmul.f32 %v1484, %v1582
        %v1645 = vmul.f32 %v1485, %v1584
        %v1646 = vmul.f32 %v1486, %v1586
        %v1647 = vmul.f32 %v1487, %v1588
        %v1648 = vmul.f32 %v1488, %v1590
        %v1649 = vmul.f32 %v1489, %v1592
        %v1650 = vmul.f32 %v1490, %v1594
        %v1651 = vmul.f32 %v1491, %v1596
        %v1652 = vmul.f32 %v1492, %v1598
        %v1653 = vmul.f32 %v1493, %v1600
        %v1654 = vmul.f32 %v1494, %v1602
        %v1655 = vmul.f32 %v1495, %v1604
        %v1656 = vmul.f32 %v1496, %v1606
        %v1657 = vmul.f32 %v1497, %v1608
        %v1658 = vmul.f32 %v1498, %v1610
        %v1659 = vmul.f32 %v1499, %v1612
        %v1660 = vmul.f32 %v1500, %v1614
        %v1661 = vmul.f32 %v1501, %v1616
        %v1662 = vmul.f32 %v1502, %v1618
        %v1663 = vmul.f32 %v1503, %v1620
        %v1664 = vmul.f32 %v1504, %v1622
        %v1665 = vmul.f32 %v1505, %v1624
        %v1666 = vmul.f32 %v1506, %v1626
        %v1667 = vmul.f32 %v1507, %v1628
        %v1668 = vmul.f32 %v1508, %v1630
        %v1669 = vmul.f32 %v1509, %v1632
        %v1670 = vmul.f32 %v1510, %v1634
        %v1671 = vmul.f32 %v1511, %v1636
        %v1672 = vmul.f32 %v1512, %v1638
        %v1673 = vmul.f32 %v1513, %v1640
        %v1674 = vmul.f32 %v1514, %v1642
        %v1675 = vsub.f32 1.0, %v1643
        %v1676 = vsub.f32 1.0, %v1644
        %v1677 = vsub.f32 1.0, %v1645
        %v1678 = vsub.f32 1.0, %v1646
        %v1679 = vsub.f32 1.0, %v1647
        %v1680 = vsub.f32 1.0, %v1648
        %v1681 = vsub.f32 1.0, %v1649
        %v1682 = vsub.f32 1.0, %v1650
        %v1683 = vsub.f32 1.0, %v1651
        %v1684 = vsub.f32 1.0, %v1652
        %v1685 = vsub.f32 1.0, %v1653
        %v1686 = vsub.f32 1.0, %v1654
        %v1687 = vsub.f32 1.0, %v1655
        %v1688 = vsub.f32 1.0, %v1656
        %v1689 = vsub.f32 1.0, %v1657
        %v1690 = vsub.f32 1.0, %v1658
        %v1691 = vsub.f32 1.0, %v1659
        %v1692 = vsub.f32 1.0, %v1660
        %v1693 = vsub.f32 1.0, %v1661
        %v1694 = vsub.f32 1.0, %v1662
        %v1695 = vsub.f32 1.0, %v1663
        %v1696 = vsub.f32 1.0, %v1664
        %v1697 = vsub.f32 1.0, %v1665
        %v1698 = vsub.f32 1.0, %v1666
        %v1699 = vsub.f32 1.0, %v1667
        %v1700 = vsub.f32 1.0, %v1668
        %v1701 = vsub.f32 1.0, %v1669
        %v1702 = vsub.f32 1.0, %v1670
        %v1703 = vsub.f32 1.0, %v1671
        %v1704 = vsub.f32 1.0, %v1672
        %v1705 = vsub.f32 1.0, %v1673
        %v1706 = vsub.f32 1.0, %v1674
        %vm1707 = vcmp.lt.f32.partialorder %v1035, 0.0
        %vm1708 = vcmp.lt.f32.partialorder %v1036, 0.0
        %vm1709 = vcmp.lt.f32.partialorder %v1037, 0.0
        %vm1710 = vcmp.lt.f32.partialorder %v1038, 0.0
        %vm1711 = vcmp.lt.f32.partialorder %v1039, 0.0
        %vm1712 = vcmp.lt.f32.partialorder %v1040, 0.0
        %vm1713 = vcmp.lt.f32.partialorder %v1041, 0.0
        %vm1714 = vcmp.lt.f32.partialorder %v1042, 0.0
        %vm1715 = vcmp.lt.f32.partialorder %v1043, 0.0
        %vm1716 = vcmp.lt.f32.partialorder %v1044, 0.0
        %vm1717 = vcmp.lt.f32.partialorder %v1045, 0.0
        %vm1718 = vcmp.lt.f32.partialorder %v1046, 0.0
        %vm1719 = vcmp.lt.f32.partialorder %v1047, 0.0
        %vm1720 = vcmp.lt.f32.partialorder %v1048, 0.0
        %vm1721 = vcmp.lt.f32.partialorder %v1049, 0.0
        %vm1722 = vcmp.lt.f32.partialorder %v1050, 0.0
        %vm1723 = vcmp.lt.f32.partialorder %v1051, 0.0
        %vm1724 = vcmp.lt.f32.partialorder %v1052, 0.0
        %vm1725 = vcmp.lt.f32.partialorder %v1053, 0.0
        %vm1726 = vcmp.lt.f32.partialorder %v1054, 0.0
        %vm1727 = vcmp.lt.f32.partialorder %v1055, 0.0
        %vm1728 = vcmp.lt.f32.partialorder %v1056, 0.0
        %vm1729 = vcmp.lt.f32.partialorder %v1057, 0.0
        %vm1730 = vcmp.lt.f32.partialorder %v1058, 0.0
        %vm1731 = vcmp.lt.f32.partialorder %v1059, 0.0
        %vm1732 = vcmp.lt.f32.partialorder %v1060, 0.0
        %vm1733 = vcmp.lt.f32.partialorder %v1061, 0.0
        %vm1734 = vcmp.lt.f32.partialorder %v1062, 0.0
        %vm1735 = vcmp.lt.f32.partialorder %v1063, 0.0
        %vm1736 = vcmp.lt.f32.partialorder %v1064, 0.0
        %vm1737 = vcmp.lt.f32.partialorder %v1065, 0.0
        %vm1738 = vcmp.lt.f32.partialorder %v1066, 0.0
        %v1739 = vsub.f32 0.0, %v1675
        %v1740 = vsub.f32 0.0, %v1676
        %v1741 = vsub.f32 0.0, %v1677
        %v1742 = vsub.f32 0.0, %v1678
        %v1743 = vsub.f32 0.0, %v1679
        %v1744 = vsub.f32 0.0, %v1680
        %v1745 = vsub.f32 0.0, %v1681
        %v1746 = vsub.f32 0.0, %v1682
        %v1747 = vsub.f32 0.0, %v1683
        %v1748 = vsub.f32 0.0, %v1684
        %v1749 = vsub.f32 0.0, %v1685
        %v1750 = vsub.f32 0.0, %v1686
        %v1751 = vsub.f32 0.0, %v1687
        %v1752 = vsub.f32 0.0, %v1688
        %v1753 = vsub.f32 0.0, %v1689
        %v1754 = vsub.f32 0.0, %v1690
        %v1755 = vsub.f32 0.0, %v1691
        %v1756 = vsub.f32 0.0, %v1692
        %v1757 = vsub.f32 0.0, %v1693
        %v1758 = vsub.f32 0.0, %v1694
        %v1759 = vsub.f32 0.0, %v1695
        %v1760 = vsub.f32 0.0, %v1696
        %v1761 = vsub.f32 0.0, %v1697
        %v1762 = vsub.f32 0.0, %v1698
        %v1763 = vsub.f32 0.0, %v1699
        %v1764 = vsub.f32 0.0, %v1700
        %v1765 = vsub.f32 0.0, %v1701
        %v1766 = vsub.f32 0.0, %v1702
        %v1767 = vsub.f32 0.0, %v1703
        %v1768 = vsub.f32 0.0, %v1704
        %v1769 = vsub.f32 0.0, %v1705
        %v1770 = vsub.f32 0.0, %v1706
        %v1771 = vsel %vm1707, %v1739, %v1675
        %v1772 = vsel %vm1708, %v1740, %v1676
        %v1773 = vsel %vm1709, %v1741, %v1677
        %v1774 = vsel %vm1710, %v1742, %v1678
        %v1775 = vsel %vm1711, %v1743, %v1679
        %v1776 = vsel %vm1712, %v1744, %v1680
        %v1777 = vsel %vm1713, %v1745, %v1681
        %v1778 = vsel %vm1714, %v1746, %v1682
        %v1779 = vsel %vm1715, %v1747, %v1683
        %v1780 = vsel %vm1716, %v1748, %v1684
        %v1781 = vsel %vm1717, %v1749, %v1685
        %v1782 = vsel %vm1718, %v1750, %v1686
        %v1783 = vsel %vm1719, %v1751, %v1687
        %v1784 = vsel %vm1720, %v1752, %v1688
        %v1785 = vsel %vm1721, %v1753, %v1689
        %v1786 = vsel %vm1722, %v1754, %v1690
        %v1787 = vsel %vm1723, %v1755, %v1691
        %v1788 = vsel %vm1724, %v1756, %v1692
        %v1789 = vsel %vm1725, %v1757, %v1693
        %v1790 = vsel %vm1726, %v1758, %v1694
        %v1791 = vsel %vm1727, %v1759, %v1695
        %v1792 = vsel %vm1728, %v1760, %v1696
        %v1793 = vsel %vm1729, %v1761, %v1697
        %v1794 = vsel %vm1730, %v1762, %v1698
        %v1795 = vsel %vm1731, %v1763, %v1699
        %v1796 = vsel %vm1732, %v1764, %v1700
        %v1797 = vsel %vm1733, %v1765, %v1701
        %v1798 = vsel %vm1734, %v1766, %v1702
        %v1799 = vsel %vm1735, %v1767, %v1703
        %v1800 = vsel %vm1736, %v1768, %v1704
        %v1801 = vsel %vm1737, %v1769, %v1705
        %v1802 = vsel %vm1738, %v1770, %v1706
        %v1803 = vadd.f32 %v1771, 1.0
        %v1804 = vadd.f32 %v1772, 1.0
        %v1805 = vadd.f32 %v1773, 1.0
        %v1806 = vadd.f32 %v1774, 1.0
        %v1807 = vadd.f32 %v1775, 1.0
        %v1808 = vadd.f32 %v1776, 1.0
        %v1809 = vadd.f32 %v1777, 1.0
        %v1810 = vadd.f32 %v1778, 1.0
        %v1811 = vadd.f32 %v1779, 1.0
        %v1812 = vadd.f32 %v1780, 1.0
        %v1813 = vadd.f32 %v1781, 1.0
        %v1814 = vadd.f32 %v1782, 1.0
        %v1815 = vadd.f32 %v1783, 1.0
        %v1816 = vadd.f32 %v1784, 1.0
        %v1817 = vadd.f32 %v1785, 1.0
        %v1818 = vadd.f32 %v1786, 1.0
        %v1819 = vadd.f32 %v1787, 1.0
        %v1820 = vadd.f32 %v1788, 1.0
        %v1821 = vadd.f32 %v1789, 1.0
        %v1822 = vadd.f32 %v1790, 1.0
        %v1823 = vadd.f32 %v1791, 1.0
        %v1824 = vadd.f32 %v1792, 1.0
        %v1825 = vadd.f32 %v1793, 1.0
        %v1826 = vadd.f32 %v1794, 1.0
        %v1827 = vadd.f32 %v1795, 1.0
        %v1828 = vadd.f32 %v1796, 1.0
        %v1829 = vadd.f32 %v1797, 1.0
        %v1830 = vadd.f32 %v1798, 1.0
        %v1831 = vadd.f32 %v1799, 1.0
        %v1832 = vadd.f32 %v1800, 1.0
        %v1833 = vadd.f32 %v1801, 1.0
        %v1834 = vadd.f32 %v1802, 1.0
        %v1835 = vmul.f32 %v1003, %v1803
        %v1836 = vmul.f32 %v1004, %v1804
        %v1837 = vmul.f32 %v1005, %v1805
        %v1838 = vmul.f32 %v1006, %v1806
        %v1839 = vmul.f32 %v1007, %v1807
        %v1840 = vmul.f32 %v1008, %v1808
        %v1841 = vmul.f32 %v1009, %v1809
        %v1842 = vmul.f32 %v1010, %v1810
        %v1843 = vmul.f32 %v1011, %v1811
        %v1844 = vmul.f32 %v1012, %v1812
        %v1845 = vmul.f32 %v1013, %v1813
        %v1846 = vmul.f32 %v1014, %v1814
        %v1847 = vmul.f32 %v1015, %v1815
        %v1848 = vmul.f32 %v1016, %v1816
        %v1849 = vmul.f32 %v1017, %v1817
        %v1850 = vmul.f32 %v1018, %v1818
        %v1851 = vmul.f32 %v1019, %v1819
        %v1852 = vmul.f32 %v1020, %v1820
        %v1853 = vmul.f32 %v1021, %v1821
        %v1854 = vmul.f32 %v1022, %v1822
        %v1855 = vmul.f32 %v1023, %v1823
        %v1856 = vmul.f32 %v1024, %v1824
        %v1857 = vmul.f32 %v1025, %v1825
        %v1858 = vmul.f32 %v1026, %v1826
        %v1859 = vmul.f32 %v1027, %v1827
        %v1860 = vmul.f32 %v1028, %v1828
        %v1861 = vmul.f32 %v1029, %v1829
        %v1862 = vmul.f32 %v1030, %v1830
        %v1863 = vmul.f32 %v1031, %v1831
        %v1864 = vmul.f32 %v1032, %v1832
        %v1865 = vmul.f32 %v1033, %v1833
        %v1866 = vmul.f32 %v1034, %v1834
        %v1867 = vpack.c.bf16 %v1836, %v1835
        %v1868 = vpack.c.bf16 %v1838, %v1837
        %v1869 = vpack.c.bf16 %v1840, %v1839
        %v1870 = vpack.c.bf16 %v1842, %v1841
        %v1871 = vpack.c.bf16 %v1844, %v1843
        %v1872 = vpack.c.bf16 %v1846, %v1845
        %v1873 = vpack.c.bf16 %v1848, %v1847
        %v1874 = vpack.c.bf16 %v1850, %v1849
        %v1875 = vpack.c.bf16 %v1852, %v1851
        %v1876 = vpack.c.bf16 %v1854, %v1853
        %v1877 = vpack.c.bf16 %v1856, %v1855
        %v1878 = vpack.c.bf16 %v1858, %v1857
        %v1879 = vpack.c.bf16 %v1860, %v1859
        %v1880 = vpack.c.bf16 %v1862, %v1861
        %v1881 = vpack.c.bf16 %v1864, %v1863
        %v1882 = vpack.c.bf16 %v1866, %v1865
        %v1883 = vld [vmem:[#allocation16] sm:$0xff]
        %v1884 = vld [vmem:[#allocation16 + $0x8] sm:$0xff]
        %v1885 = vld [vmem:[#allocation16 + $0x10] sm:$0xff]
        %v1886 = vld [vmem:[#allocation16 + $0x18] sm:$0xff]
        %v1887 = vld [vmem:[#allocation16 + $0x20] sm:$0xff]
        %v1888 = vld [vmem:[#allocation16 + $0x28] sm:$0xff]
        %v1889 = vld [vmem:[#allocation16 + $0x30] sm:$0xff]
        %v1890 = vld [vmem:[#allocation16 + $0x38] sm:$0xff]
        %v1891 = vld [vmem:[#allocation16 + $0x40] sm:$0xff]
        %v1892 = vld [vmem:[#allocation16 + $0x48] sm:$0xff]
        %v1893 = vld [vmem:[#allocation16 + $0x50] sm:$0xff]
        %v1894 = vld [vmem:[#allocation16 + $0x58] sm:$0xff]
        %v1895 = vld [vmem:[#allocation16 + $0x60] sm:$0xff]
        %v1896 = vld [vmem:[#allocation16 + $0x68] sm:$0xff]
        %v1897 = vld [vmem:[#allocation16 + $0x70] sm:$0xff]
        %v1898 = vld [vmem:[#allocation16 + $0x78] sm:$0xff]
        %v1899 = vld [vmem:[%s9] sm:$0x3]
        %v1901 = vlaneseq
        %v1902 = vshrl.u32 %v1901, 7
        %v1903 = vsub.s32 0, %v1902
        %v1904 = vrot.slane %v1899, %v1903
        %v1905 = vlaneseq
        %v1906 = vshrl.u32 %v1905, 7
        %v1907 = vsub.s32 1, %v1906
        %v1908 = vrot.slane %v1899, %v1907
        %v1927 = vunpack.c.l.b16 %v1883
        %v1928 = vunpack.c.h.b16 %v1883
        %v1929 = vunpack.c.l.b16 %v1884
        %v1930 = vunpack.c.h.b16 %v1884
        %v1931 = vunpack.c.l.b16 %v1885
        %v1932 = vunpack.c.h.b16 %v1885
        %v1933 = vunpack.c.l.b16 %v1886
        %v1934 = vunpack.c.h.b16 %v1886
        %v1935 = vunpack.c.l.b16 %v1887
        %v1936 = vunpack.c.h.b16 %v1887
        %v1937 = vunpack.c.l.b16 %v1888
        %v1938 = vunpack.c.h.b16 %v1888
        %v1939 = vunpack.c.l.b16 %v1889
        %v1940 = vunpack.c.h.b16 %v1889
        %v1941 = vunpack.c.l.b16 %v1890
        %v1942 = vunpack.c.h.b16 %v1890
        %v1943 = vunpack.c.l.b16 %v1891
        %v1944 = vunpack.c.h.b16 %v1891
        %v1945 = vunpack.c.l.b16 %v1892
        %v1946 = vunpack.c.h.b16 %v1892
        %v1947 = vunpack.c.l.b16 %v1893
        %v1948 = vunpack.c.h.b16 %v1893
        %v1949 = vunpack.c.l.b16 %v1894
        %v1950 = vunpack.c.h.b16 %v1894
        %v1951 = vunpack.c.l.b16 %v1895
        %v1952 = vunpack.c.h.b16 %v1895
        %v1953 = vunpack.c.l.b16 %v1896
        %v1954 = vunpack.c.h.b16 %v1896
        %v1955 = vunpack.c.l.b16 %v1897
        %v1956 = vunpack.c.h.b16 %v1897
        %v1957 = vunpack.c.l.b16 %v1898
        %v1958 = vunpack.c.h.b16 %v1898
        %v1959 = vpack.c.b16 %v1929, %v1927
        %v1960 = vpack.c.b16 %v1930, %v1928
        %v1961 = vpack.c.b16 %v1933, %v1931
        %v1962 = vpack.c.b16 %v1934, %v1932
        %v1963 = vpack.c.b16 %v1937, %v1935
        %v1964 = vpack.c.b16 %v1938, %v1936
        %v1965 = vpack.c.b16 %v1941, %v1939
        %v1966 = vpack.c.b16 %v1942, %v1940
        %v1967 = vpack.c.b16 %v1945, %v1943
        %v1968 = vpack.c.b16 %v1946, %v1944
        %v1969 = vpack.c.b16 %v1949, %v1947
        %v1970 = vpack.c.b16 %v1950, %v1948
        %v1971 = vpack.c.b16 %v1953, %v1951
        %v1972 = vpack.c.b16 %v1954, %v1952
        %v1973 = vpack.c.b16 %v1957, %v1955
        %v1974 = vpack.c.b16 %v1958, %v1956
        %1991 = vmatprep.subr.bf16.mxu0 %v1960
        %1992 = vmatpush1.bf16.msra.mxu0 %v1959
        %1993 = vmatprep.subr.bf16.mxu0 %v1962
        %1994 = vmatpush1.bf16.msra.mxu0 %v1961
        %1995 = vmatprep.subr.bf16.mxu0 %v1964
        %1996 = vmatpush1.bf16.msra.mxu0 %v1963
        %1997 = vmatprep.subr.bf16.mxu0 %v1966
        %1998 = vmatpush1.bf16.msra.mxu0 %v1965
        %1999 = vmatprep.subr.bf16.mxu0 %v1968
        %2000 = vmatpush1.bf16.msra.mxu0 %v1967
        %2001 = vmatprep.subr.bf16.mxu0 %v1970
        %2002 = vmatpush1.bf16.msra.mxu0 %v1969
        %2003 = vmatprep.subr.bf16.mxu0 %v1972
        %2004 = vmatpush1.bf16.msra.mxu0 %v1971
        %2005 = vmatprep.subr.bf16.mxu0 %v1974
        %2006 = vmatpush1.bf16.msra.mxu0 %v1973
        %2007 = vmatprep.subr.bf16.mxu0 0
        %2008 = vmatpush1.bf16.msra.mxu0 0
        %2009 = vmatprep.subr.bf16.mxu0 0
        %2010 = vmatpush1.bf16.msra.mxu0 0
        %2011 = vmatprep.subr.bf16.mxu0 0
        %2012 = vmatpush1.bf16.msra.mxu0 0
        %2013 = vmatprep.subr.bf16.mxu0 0
        %2014 = vmatpush1.bf16.msra.mxu0 0
        %2015 = vmatprep.subr.bf16.mxu0 0
        %2016 = vmatpush1.bf16.msra.mxu0 0
        %2017 = vmatprep.subr.bf16.mxu0 0
        %2018 = vmatpush1.bf16.msra.mxu0 0
        %2019 = vmatprep.subr.bf16.mxu0 0
        %2020 = vmatpush1.bf16.msra.mxu0 0
        %2021 = vmatprep.subr.bf16.mxu0 0
        %2022 = vmatpush1.bf16.msra.mxu0 0
        %2023 = vmatprep.mubr.bf16.mxu0 0
        %2024 = vmatmul.mubr.bf16.gmra.mrb[0].mxu0 %v1867
        %v2025 = vpop.f32.mrb[0].mxu0
        %v2026 = vadd.f32 %v1904, %v2025
        %v2027 = vpop.f32.mrb[0].mxu0
        %v2028 = vadd.f32 %v1908, %v2027
        %v2029 = vpop.f32.mrb[0].mxu0
        %v2030 = vadd.f32 %v1904, %v2029
        %v2031 = vpop.f32.mrb[0].mxu0
        %v2032 = vadd.f32 %v1908, %v2031
        %2033 = vmatprep.mubr.bf16.mxu0 0
        %2034 = vmatmul.mubr.bf16.gmra.mrb[0].mxu0 %v1868
        %v2035 = vpop.f32.mrb[0].mxu0
        %v2036 = vadd.f32 %v1904, %v2035
        %v2037 = vpop.f32.mrb[0].mxu0
        %v2038 = vadd.f32 %v1908, %v2037
        %v2039 = vpop.f32.mrb[0].mxu0
        %v2040 = vadd.f32 %v1904, %v2039
        %v2041 = vpop.f32.mrb[0].mxu0
        %v2042 = vadd.f32 %v1908, %v2041
        %2043 = vmatprep.mubr.bf16.mxu0 0
        %2044 = vmatmul.mubr.bf16.gmra.mrb[0].mxu0 %v1869
        %v2045 = vpop.f32.mrb[0].mxu0
        %v2046 = vadd.f32 %v1904, %v2045
        %v2047 = vpop.f32.mrb[0].mxu0
        %v2048 = vadd.f32 %v1908, %v2047
        %v2049 = vpop.f32.mrb[0].mxu0
        %v2050 = vadd.f32 %v1904, %v2049
        %v2051 = vpop.f32.mrb[0].mxu0
        %v2052 = vadd.f32 %v1908, %v2051
        %2053 = vmatprep.mubr.bf16.mxu0 0
        %2054 = vmatmul.mubr.bf16.gmra.mrb[0].mxu0 %v1870
        %v2055 = vpop.f32.mrb[0].mxu0
        %v2056 = vadd.f32 %v1904, %v2055
        %v2057 = vpop.f32.mrb[0].mxu0
        %v2058 = vadd.f32 %v1908, %v2057
        %v2059 = vpop.f32.mrb[0].mxu0
        %v2060 = vadd.f32 %v1904, %v2059
        %v2061 = vpop.f32.mrb[0].mxu0
        %v2062 = vadd.f32 %v1908, %v2061
        %2063 = vmatprep.mubr.bf16.mxu0 0
        %2064 = vmatmul.mubr.bf16.gmra.mrb[0].mxu0 %v1871
        %v2065 = vpop.f32.mrb[0].mxu0
        %v2066 = vadd.f32 %v1904, %v2065
        %v2067 = vpop.f32.mrb[0].mxu0
        %v2068 = vadd.f32 %v1908, %v2067
        %v2069 = vpop.f32.mrb[0].mxu0
        %v2070 = vadd.f32 %v1904, %v2069
        %v2071 = vpop.f32.mrb[0].mxu0
        %v2072 = vadd.f32 %v1908, %v2071
        %2073 = vmatprep.mubr.bf16.mxu0 0
        %2074 = vmatmul.mubr.bf16.gmra.mrb[0].mxu0 %v1872
        %v2075 = vpop.f32.mrb[0].mxu0
        %v2076 = vadd.f32 %v1904, %v2075
        %v2077 = vpop.f32.mrb[0].mxu0
        %v2078 = vadd.f32 %v1908, %v2077
        %v2079 = vpop.f32.mrb[0].mxu0
        %v2080 = vadd.f32 %v1904, %v2079
        %v2081 = vpop.f32.mrb[0].mxu0
        %v2082 = vadd.f32 %v1908, %v2081
        %2083 = vmatprep.mubr.bf16.mxu0 0
        %2084 = vmatmul.mubr.bf16.gmra.mrb[0].mxu0 %v1873
        %v2085 = vpop.f32.mrb[0].mxu0
        %v2086 = vadd.f32 %v1904, %v2085
        %v2087 = vpop.f32.mrb[0].mxu0
        %v2088 = vadd.f32 %v1908, %v2087
        %v2089 = vpop.f32.mrb[0].mxu0
        %v2090 = vadd.f32 %v1904, %v2089
        %v2091 = vpop.f32.mrb[0].mxu0
        %v2092 = vadd.f32 %v1908, %v2091
        %2093 = vmatprep.mubr.bf16.mxu0 0
        %2094 = vmatmul.mubr.bf16.gmra.mrb[0].mxu0 %v1874
        %v2095 = vpop.f32.mrb[0].mxu0
        %v2096 = vadd.f32 %v1904, %v2095
        %v2097 = vpop.f32.mrb[0].mxu0
        %v2098 = vadd.f32 %v1908, %v2097
        %v2099 = vpop.f32.mrb[0].mxu0
        %v2100 = vadd.f32 %v1904, %v2099
        %v2101 = vpop.f32.mrb[0].mxu0
        %v2102 = vadd.f32 %v1908, %v2101
        %2103 = vmatprep.mubr.bf16.mxu0 0
        %2104 = vmatmul.mubr.bf16.gmra.mrb[0].mxu0 %v1875
        %v2105 = vpop.f32.mrb[0].mxu0
        %v2106 = vadd.f32 %v1904, %v2105
        %v2107 = vpop.f32.mrb[0].mxu0
        %v2108 = vadd.f32 %v1908, %v2107
        %v2109 = vpop.f32.mrb[0].mxu0
        %v2110 = vadd.f32 %v1904, %v2109
        %v2111 = vpop.f32.mrb[0].mxu0
        %v2112 = vadd.f32 %v1908, %v2111
        %2113 = vmatprep.mubr.bf16.mxu0 0
        %2114 = vmatmul.mubr.bf16.gmra.mrb[0].mxu0 %v1876
        %v2115 = vpop.f32.mrb[0].mxu0
        %v2116 = vadd.f32 %v1904, %v2115
        %v2117 = vpop.f32.mrb[0].mxu0
        %v2118 = vadd.f32 %v1908, %v2117
        %v2119 = vpop.f32.mrb[0].mxu0
        %v2120 = vadd.f32 %v1904, %v2119
        %v2121 = vpop.f32.mrb[0].mxu0
        %v2122 = vadd.f32 %v1908, %v2121
        %2123 = vmatprep.mubr.bf16.mxu0 0
        %2124 = vmatmul.mubr.bf16.gmra.mrb[0].mxu0 %v1877
        %v2125 = vpop.f32.mrb[0].mxu0
        %v2126 = vadd.f32 %v1904, %v2125
        %v2127 = vpop.f32.mrb[0].mxu0
        %v2128 = vadd.f32 %v1908, %v2127
        %v2129 = vpop.f32.mrb[0].mxu0
        %v2130 = vadd.f32 %v1904, %v2129
        %v2131 = vpop.f32.mrb[0].mxu0
        %v2132 = vadd.f32 %v1908, %v2131
        %2133 = vmatprep.mubr.bf16.mxu0 0
        %2134 = vmatmul.mubr.bf16.gmra.mrb[0].mxu0 %v1878
        %v2135 = vpop.f32.mrb[0].mxu0
        %v2136 = vadd.f32 %v1904, %v2135
        %v2137 = vpop.f32.mrb[0].mxu0
        %v2138 = vadd.f32 %v1908, %v2137
        %v2139 = vpop.f32.mrb[0].mxu0
        %v2140 = vadd.f32 %v1904, %v2139
        %v2141 = vpop.f32.mrb[0].mxu0
        %v2142 = vadd.f32 %v1908, %v2141
        %2143 = vmatprep.mubr.bf16.mxu0 0
        %2144 = vmatmul.mubr.bf16.gmra.mrb[0].mxu0 %v1879
        %v2145 = vpop.f32.mrb[0].mxu0
        %v2146 = vadd.f32 %v1904, %v2145
        %v2147 = vpop.f32.mrb[0].mxu0
        %v2148 = vadd.f32 %v1908, %v2147
        %v2149 = vpop.f32.mrb[0].mxu0
        %v2150 = vadd.f32 %v1904, %v2149
        %v2151 = vpop.f32.mrb[0].mxu0
        %v2152 = vadd.f32 %v1908, %v2151
        %2153 = vmatprep.mubr.bf16.mxu0 0
        %2154 = vmatmul.mubr.bf16.gmra.mrb[0].mxu0 %v1880
        %v2155 = vpop.f32.mrb[0].mxu0
        %v2156 = vadd.f32 %v1904, %v2155
        %v2157 = vpop.f32.mrb[0].mxu0
        %v2158 = vadd.f32 %v1908, %v2157
        %v2159 = vpop.f32.mrb[0].mxu0
        %v2160 = vadd.f32 %v1904, %v2159
        %v2161 = vpop.f32.mrb[0].mxu0
        %v2162 = vadd.f32 %v1908, %v2161
        %2163 = vmatprep.mubr.bf16.mxu0 0
        %2164 = vmatmul.mubr.bf16.gmra.mrb[0].mxu0 %v1881
        %v2165 = vpop.f32.mrb[0].mxu0
        %v2166 = vadd.f32 %v1904, %v2165
        %v2167 = vpop.f32.mrb[0].mxu0
        %v2168 = vadd.f32 %v1908, %v2167
        %v2169 = vpop.f32.mrb[0].mxu0
        %v2170 = vadd.f32 %v1904, %v2169
        %v2171 = vpop.f32.mrb[0].mxu0
        %v2172 = vadd.f32 %v1908, %v2171
        %2173 = vmatprep.mubr.bf16.mxu0 0
        %2174 = vmatmul.mubr.bf16.gmra.mrb[0].mxu0 %v1882
        %v2175 = vpop.f32.mrb[0].mxu0
        %v2176 = vadd.f32 %v1904, %v2175
        %v2177 = vpop.f32.mrb[0].mxu0
        %v2178 = vadd.f32 %v1908, %v2177
        %v2179 = vpop.f32.mrb[0].mxu0
        %v2180 = vadd.f32 %v1904, %v2179
        %v2181 = vpop.f32.mrb[0].mxu0
        %v2182 = vadd.f32 %v1908, %v2181
        %2183 = vdwg.mxu0
        %v2184 = vsub.f32 0.0, %v2028
        %v2185 = vsub.f32 0.0, %v2032
        %v2186 = vsub.f32 0.0, %v2038
        %v2187 = vsub.f32 0.0, %v2042
        %v2188 = vsub.f32 0.0, %v2048
        %v2189 = vsub.f32 0.0, %v2052
        %v2190 = vsub.f32 0.0, %v2058
        %v2191 = vsub.f32 0.0, %v2062
        %v2192 = vsub.f32 0.0, %v2068
        %v2193 = vsub.f32 0.0, %v2072
        %v2194 = vsub.f32 0.0, %v2078
        %v2195 = vsub.f32 0.0, %v2082
        %v2196 = vsub.f32 0.0, %v2088
        %v2197 = vsub.f32 0.0, %v2092
        %v2198 = vsub.f32 0.0, %v2098
        %v2199 = vsub.f32 0.0, %v2102
        %v2200 = vsub.f32 0.0, %v2108
        %v2201 = vsub.f32 0.0, %v2112
        %v2202 = vsub.f32 0.0, %v2118
        %v2203 = vsub.f32 0.0, %v2122
        %v2204 = vsub.f32 0.0, %v2128
        %v2205 = vsub.f32 0.0, %v2132
        %v2206 = vsub.f32 0.0, %v2138
        %v2207 = vsub.f32 0.0, %v2142
        %v2208 = vsub.f32 0.0, %v2148
        %v2209 = vsub.f32 0.0, %v2152
        %v2210 = vsub.f32 0.0, %v2158
        %v2211 = vsub.f32 0.0, %v2162
        %v2212 = vsub.f32 0.0, %v2168
        %v2213 = vsub.f32 0.0, %v2172
        %v2214 = vsub.f32 0.0, %v2178
        %v2215 = vsub.f32 0.0, %v2182
        %v2216 = vmul.f32 %v2184, 1.442695
        %v2217 = vpow.pop %v2216
        %v2218 = vmul.f32 %v2185, 1.442695
        %v2219 = vpow.pop %v2218
        %v2220 = vmul.f32 %v2186, 1.442695
        %v2221 = vpow.pop %v2220
        %v2222 = vmul.f32 %v2187, 1.442695
        %v2223 = vpow.pop %v2222
        %v2224 = vmul.f32 %v2188, 1.442695
        %v2225 = vpow.pop %v2224
        %v2226 = vmul.f32 %v2189, 1.442695
        %v2227 = vpow.pop %v2226
        %v2228 = vmul.f32 %v2190, 1.442695
        %v2229 = vpow.pop %v2228
        %v2230 = vmul.f32 %v2191, 1.442695
        %v2231 = vpow.pop %v2230
        %v2232 = vmul.f32 %v2192, 1.442695
        %v2233 = vpow.pop %v2232
        %v2234 = vmul.f32 %v2193, 1.442695
        %v2235 = vpow.pop %v2234
        %v2236 = vmul.f32 %v2194, 1.442695
        %v2237 = vpow.pop %v2236
        %v2238 = vmul.f32 %v2195, 1.442695
        %v2239 = vpow.pop %v2238
        %v2240 = vmul.f32 %v2196, 1.442695
        %v2241 = vpow.pop %v2240
        %v2242 = vmul.f32 %v2197, 1.442695
        %v2243 = vpow.pop %v2242
        %v2244 = vmul.f32 %v2198, 1.442695
        %v2245 = vpow.pop %v2244
        %v2246 = vmul.f32 %v2199, 1.442695
        %v2247 = vpow.pop %v2246
        %v2248 = vmul.f32 %v2200, 1.442695
        %v2249 = vpow.pop %v2248
        %v2250 = vmul.f32 %v2201, 1.442695
        %v2251 = vpow.pop %v2250
        %v2252 = vmul.f32 %v2202, 1.442695
        %v2253 = vpow.pop %v2252
        %v2254 = vmul.f32 %v2203, 1.442695
        %v2255 = vpow.pop %v2254
        %v2256 = vmul.f32 %v2204, 1.442695
        %v2257 = vpow.pop %v2256
        %v2258 = vmul.f32 %v2205, 1.442695
        %v2259 = vpow.pop %v2258
        %v2260 = vmul.f32 %v2206, 1.442695
        %v2261 = vpow.pop %v2260
        %v2262 = vmul.f32 %v2207, 1.442695
        %v2263 = vpow.pop %v2262
        %v2264 = vmul.f32 %v2208, 1.442695
        %v2265 = vpow.pop %v2264
        %v2266 = vmul.f32 %v2209, 1.442695
        %v2267 = vpow.pop %v2266
        %v2268 = vmul.f32 %v2210, 1.442695
        %v2269 = vpow.pop %v2268
        %v2270 = vmul.f32 %v2211, 1.442695
        %v2271 = vpow.pop %v2270
        %v2272 = vmul.f32 %v2212, 1.442695
        %v2273 = vpow.pop %v2272
        %v2274 = vmul.f32 %v2213, 1.442695
        %v2275 = vpow.pop %v2274
        %v2276 = vmul.f32 %v2214, 1.442695
        %v2277 = vpow.pop %v2276
        %v2278 = vmul.f32 %v2215, 1.442695
        %v2279 = vpow.pop %v2278
        %v2280 = vadd.f32 %v2217, 1.0
        %v2281 = vadd.f32 %v2219, 1.0
        %v2282 = vadd.f32 %v2221, 1.0
        %v2283 = vadd.f32 %v2223, 1.0
        %v2284 = vadd.f32 %v2225, 1.0
        %v2285 = vadd.f32 %v2227, 1.0
        %v2286 = vadd.f32 %v2229, 1.0
        %v2287 = vadd.f32 %v2231, 1.0
        %v2288 = vadd.f32 %v2233, 1.0
        %v2289 = vadd.f32 %v2235, 1.0
        %v2290 = vadd.f32 %v2237, 1.0
        %v2291 = vadd.f32 %v2239, 1.0
        %v2292 = vadd.f32 %v2241, 1.0
        %v2293 = vadd.f32 %v2243, 1.0
        %v2294 = vadd.f32 %v2245, 1.0
        %v2295 = vadd.f32 %v2247, 1.0
        %v2296 = vadd.f32 %v2249, 1.0
        %v2297 = vadd.f32 %v2251, 1.0
        %v2298 = vadd.f32 %v2253, 1.0
        %v2299 = vadd.f32 %v2255, 1.0
        %v2300 = vadd.f32 %v2257, 1.0
        %v2301 = vadd.f32 %v2259, 1.0
        %v2302 = vadd.f32 %v2261, 1.0
        %v2303 = vadd.f32 %v2263, 1.0
        %v2304 = vadd.f32 %v2265, 1.0
        %v2305 = vadd.f32 %v2267, 1.0
        %v2306 = vadd.f32 %v2269, 1.0
        %v2307 = vadd.f32 %v2271, 1.0
        %v2308 = vadd.f32 %v2273, 1.0
        %v2309 = vadd.f32 %v2275, 1.0
        %v2310 = vadd.f32 %v2277, 1.0
        %v2311 = vadd.f32 %v2279, 1.0
        %v2312 = vrcp.pop %v2280
        %v2313 = vmul.f32 1.0, %v2312
        %v2314 = vrcp.pop %v2281
        %v2315 = vmul.f32 1.0, %v2314
        %v2316 = vrcp.pop %v2282
        %v2317 = vmul.f32 1.0, %v2316
        %v2318 = vrcp.pop %v2283
        %v2319 = vmul.f32 1.0, %v2318
        %v2320 = vrcp.pop %v2284
        %v2321 = vmul.f32 1.0, %v2320
        %v2322 = vrcp.pop %v2285
        %v2323 = vmul.f32 1.0, %v2322
        %v2324 = vrcp.pop %v2286
        %v2325 = vmul.f32 1.0, %v2324
        %v2326 = vrcp.pop %v2287
        %v2327 = vmul.f32 1.0, %v2326
        %v2328 = vrcp.pop %v2288
        %v2329 = vmul.f32 1.0, %v2328
        %v2330 = vrcp.pop %v2289
        %v2331 = vmul.f32 1.0, %v2330
        %v2332 = vrcp.pop %v2290
        %v2333 = vmul.f32 1.0, %v2332
        %v2334 = vrcp.pop %v2291
        %v2335 = vmul.f32 1.0, %v2334
        %v2336 = vrcp.pop %v2292
        %v2337 = vmul.f32 1.0, %v2336
        %v2338 = vrcp.pop %v2293
        %v2339 = vmul.f32 1.0, %v2338
        %v2340 = vrcp.pop %v2294
        %v2341 = vmul.f32 1.0, %v2340
        %v2342 = vrcp.pop %v2295
        %v2343 = vmul.f32 1.0, %v2342
        %v2344 = vrcp.pop %v2296
        %v2345 = vmul.f32 1.0, %v2344
        %v2346 = vrcp.pop %v2297
        %v2347 = vmul.f32 1.0, %v2346
        %v2348 = vrcp.pop %v2298
        %v2349 = vmul.f32 1.0, %v2348
        %v2350 = vrcp.pop %v2299
        %v2351 = vmul.f32 1.0, %v2350
        %v2352 = vrcp.pop %v2300
        %v2353 = vmul.f32 1.0, %v2352
        %v2354 = vrcp.pop %v2301
        %v2355 = vmul.f32 1.0, %v2354
        %v2356 = vrcp.pop %v2302
        %v2357 = vmul.f32 1.0, %v2356
        %v2358 = vrcp.pop %v2303
        %v2359 = vmul.f32 1.0, %v2358
        %v2360 = vrcp.pop %v2304
        %v2361 = vmul.f32 1.0, %v2360
        %v2362 = vrcp.pop %v2305
        %v2363 = vmul.f32 1.0, %v2362
        %v2364 = vrcp.pop %v2306
        %v2365 = vmul.f32 1.0, %v2364
        %v2366 = vrcp.pop %v2307
        %v2367 = vmul.f32 1.0, %v2366
        %v2368 = vrcp.pop %v2308
        %v2369 = vmul.f32 1.0, %v2368
        %v2370 = vrcp.pop %v2309
        %v2371 = vmul.f32 1.0, %v2370
        %v2372 = vrcp.pop %v2310
        %v2373 = vmul.f32 1.0, %v2372
        %v2374 = vrcp.pop %v2311
        %v2375 = vmul.f32 1.0, %v2374
        %v2376 = vmul.f32 %v2026, %v2313
        %v2377 = vmul.f32 %v2030, %v2315
        %v2378 = vmul.f32 %v2036, %v2317
        %v2379 = vmul.f32 %v2040, %v2319
        %v2380 = vmul.f32 %v2046, %v2321
        %v2381 = vmul.f32 %v2050, %v2323
        %v2382 = vmul.f32 %v2056, %v2325
        %v2383 = vmul.f32 %v2060, %v2327
        %v2384 = vmul.f32 %v2066, %v2329
        %v2385 = vmul.f32 %v2070, %v2331
        %v2386 = vmul.f32 %v2076, %v2333
        %v2387 = vmul.f32 %v2080, %v2335
        %v2388 = vmul.f32 %v2086, %v2337
        %v2389 = vmul.f32 %v2090, %v2339
        %v2390 = vmul.f32 %v2096, %v2341
        %v2391 = vmul.f32 %v2100, %v2343
        %v2392 = vmul.f32 %v2106, %v2345
        %v2393 = vmul.f32 %v2110, %v2347
        %v2394 = vmul.f32 %v2116, %v2349
        %v2395 = vmul.f32 %v2120, %v2351
        %v2396 = vmul.f32 %v2126, %v2353
        %v2397 = vmul.f32 %v2130, %v2355
        %v2398 = vmul.f32 %v2136, %v2357
        %v2399 = vmul.f32 %v2140, %v2359
        %v2400 = vmul.f32 %v2146, %v2361
        %v2401 = vmul.f32 %v2150, %v2363
        %v2402 = vmul.f32 %v2156, %v2365
        %v2403 = vmul.f32 %v2160, %v2367
        %v2404 = vmul.f32 %v2166, %v2369
        %v2405 = vmul.f32 %v2170, %v2371
        %v2406 = vmul.f32 %v2176, %v2373
        %v2407 = vmul.f32 %v2180, %v2375
        %2408 = vst [vmem:[%s482] sm:$0xff] %v2376
        %2409 = vst [vmem:[%s482 + $0x8] sm:$0xff] %v2377
        %2410 = vst [vmem:[%s482 + $0x10] sm:$0xff] %v2378
        %2411 = vst [vmem:[%s482 + $0x18] sm:$0xff] %v2379
        %2412 = vst [vmem:[%s482 + $0x20] sm:$0xff] %v2380
        %2413 = vst [vmem:[%s482 + $0x28] sm:$0xff] %v2381
        %2414 = vst [vmem:[%s482 + $0x30] sm:$0xff] %v2382
        %2415 = vst [vmem:[%s482 + $0x38] sm:$0xff] %v2383
        %2416 = vst [vmem:[%s482 + $0x40] sm:$0xff] %v2384
        %2417 = vst [vmem:[%s482 + $0x48] sm:$0xff] %v2385
        %2418 = vst [vmem:[%s482 + $0x50] sm:$0xff] %v2386
        %2419 = vst [vmem:[%s482 + $0x58] sm:$0xff] %v2387
        %2420 = vst [vmem:[%s482 + $0x60] sm:$0xff] %v2388
        %2421 = vst [vmem:[%s482 + $0x68] sm:$0xff] %v2389
        %2422 = vst [vmem:[%s482 + $0x70] sm:$0xff] %v2390
        %2423 = vst [vmem:[%s482 + $0x78] sm:$0xff] %v2391
        %2424 = vst [vmem:[%s482 + $0x80] sm:$0xff] %v2392
        %2425 = vst [vmem:[%s482 + $0x88] sm:$0xff] %v2393
        %2426 = vst [vmem:[%s482 + $0x90] sm:$0xff] %v2394
        %2427 = vst [vmem:[%s482 + $0x98] sm:$0xff] %v2395
        %2428 = vst [vmem:[%s482 + $0xa0] sm:$0xff] %v2396
        %2429 = vst [vmem:[%s482 + $0xa8] sm:$0xff] %v2397
        %2430 = vst [vmem:[%s482 + $0xb0] sm:$0xff] %v2398
        %2431 = vst [vmem:[%s482 + $0xb8] sm:$0xff] %v2399
        %2432 = vst [vmem:[%s482 + $0xc0] sm:$0xff] %v2400
        %2433 = vst [vmem:[%s482 + $0xc8] sm:$0xff] %v2401
        %2434 = vst [vmem:[%s482 + $0xd0] sm:$0xff] %v2402
        %2435 = vst [vmem:[%s482 + $0xd8] sm:$0xff] %v2403
        %2436 = vst [vmem:[%s482 + $0xe0] sm:$0xff] %v2404
        %2437 = vst [vmem:[%s482 + $0xe8] sm:$0xff] %v2405
        %2438 = vst [vmem:[%s482 + $0xf0] sm:$0xff] %v2406
        %2439 = vst [vmem:[%s482 + $0xf8] sm:$0xff] %v2407
        %s2440 = sand.u32 %s269, 1
        %s2441 = scalar_lea.sflag [#allocation7], %s2440
        %s2442 = sand.u32 %s269, 1
        %s2443 = smul.addr %s2442, 256
        %s2444 = scalar_lea.vmem [#allocation17], %s2443
        // Predicated region
        $region100: #{tpu_custom_call.1} parent=59 // pred_check
          %p2445 = pneg %p279
        $region101: #{tpu_custom_call.1} parent=59 // pred_check_branch
          %2447 = sbr.rel (%p2445) target = $region103
        $region102: #{tpu_custom_call.1} parent=59 // pred_region
          %s2448 = smul.u32 32, %s35
          %s2450 = ssub.s32 4096, 4096
          %2451 = vsyncadd %s2441, %s2450
          %s2452 = smul.addr %s34, 64
          %s2453 = sadd.s32 %s2448, %s2452
          %s2454 = smul.addr %s2453, 128
          %s2455 = scalar_lea.hbm %s10, %s2454
          %s2456 = sshll.u32 %s2444, 4
          %s2457 = int_to_ptr.vmem [resolvable:$true] %s2456
          %2462 = dma.vmem_to_hbm [thread:$0]  %s2457, 4096, %s2455, %s2441, 128, 128, 8
        $region103: #{tpu_custom_call.1} parent=59 // pred_fallthru
          _
      $region60: #{tpu_custom_call.1} parent=5 // pred_fallthru
        _
      %p2463 = scmp.le.s32.totalorder 2, %s25
      // Predicated region
      $region104: #{tpu_custom_call.1} parent=5 // pred_check
        %p2464 = pneg %p2463
      $region105: #{tpu_custom_call.1} parent=5 // pred_check_branch
        %2466 = sbr.rel (%p2464) target = $region107
      $region106: #{tpu_custom_call.1} parent=5 // pred_region
        %s2467 = ssub.s32 %s25, 2
        // Predicated region
        $region108: #{tpu_custom_call.1} parent=106 // pred_check
          %p2468 = pneg %p285
        $region109: #{tpu_custom_call.1} parent=106 // pred_check_branch
          %2470 = sbr.rel (%p2468) target = $region111
        $region110: #{tpu_custom_call.1} parent=106 // pred_region
          %s2471 = sand.u32 %s270, 1
          %s2472 = scalar_lea.sflag [#allocation7], %s2471
          %s2473 = sand.u32 %s270, 1
          %s2474 = smul.addr %s2473, 256
          %s2475 = scalar_lea.vmem [#allocation17], %s2474
          %2476 = dma.done %s2472, 4096
        $region111: #{tpu_custom_call.1} parent=106 // pred_fallthru
          _
      $region107: #{tpu_custom_call.1} parent=5 // pred_fallthru
        _
    $region6: #{tpu_custom_call.1} parent=1 // loop_footer
      %s29 = sadd.s32 1, %s25
    $region7: #{tpu_custom_call.1} parent=1 // loop_footer_branch
      %24 = sbr.rel target = $region3
    $region8: #{tpu_custom_call.1} parent=1 // loop_exit
      _
    %2477 = vsyncpa [#allocation6], 1
    %s2478 = scalar_lea.sflag [#allocation6], 1
    %2479 = vsyncpa %s2478, 1
    %2480 = vsyncpa [#allocation9], 1
    %2481 = vsyncpa [#allocation12], 1
    %2482 = vsyncpa [#allocation15], 1
    %2483 = vsyncpa [#allocation7], 1
    %s2484 = scalar_lea.sflag [#allocation7], 1
    %2485 = vsyncpa %s2484, 1

</llo_original>
